<compile_context>
chip_gen: v7x
topology: tpu7x:2x2x1
jax: 0.10.0
libtpu: 0.0.40
codegen_flags: <defaults>
</compile_context>

<pallas_src>
import functools

import jax
import jax.numpy as jnp
from jax.experimental import pallas as pl
from jax.experimental.pallas import tpu as pltpu

LRELU_SLOPE = 0.2
BN_EPS = 1e-5
LANE = 128


def _round_up(a, b):
    return (a + b - 1) // b * b


# ---------------------------------------------------------------------------
# Kernel 1: fused conv-as-matmul + BatchNorm (training-mode batch stats) + LeakyReLU,
# gridded over M with a two-phase BN (stats pass, then normalize pass).
# ---------------------------------------------------------------------------
def _conv_bn_lrelu_kernel(p_ref, w_ref, o_ref, sum_ref, sq_ref, *, m_true, tile_m):
    phase = pl.program_id(0)   # 0: accumulate stats, 1: normalize + activate + store
    mi = pl.program_id(1)      # M-tile index

    @pl.when(jnp.logical_and(phase == 0, mi == 0))
    def _():
        sum_ref[...] = jnp.zeros_like(sum_ref)
        sq_ref[...] = jnp.zeros_like(sq_ref)

    # (tile_m, K) @ (K, Coutp) on the MXU, bf16 inputs, f32 accumulation.
    y = jnp.dot(p_ref[...], w_ref[...], preferred_element_type=jnp.float32)

    # Mask rows beyond the true M (zero-padded patch rows must not pollute BN stats).
    row = mi * tile_m + jax.lax.broadcasted_iota(jnp.int32, y.shape, 0)
    valid = row < m_true

    @pl.when(phase == 0)
    def _():
        ym = jnp.where(valid, y, 0.0)
        sum_ref[...] += jnp.sum(ym, axis=0, keepdims=True)
        sq_ref[...] += jnp.sum(ym * ym, axis=0, keepdims=True)

    @pl.when(phase == 1)
    def _():
        inv_m = 1.0 / float(m_true)
        mean = sum_ref[...] * inv_m                                   # (1, Coutp)
        var = jnp.maximum(sq_ref[...] * inv_m - mean * mean, 0.0)     # biased variance
        yn = (y - mean) * jax.lax.rsqrt(var + BN_EPS)                 # gamma=1, beta=0
        # LeakyReLU(0.2) == max(x, 0.2*x): one vmul + one vmax on the VPU.
        o_ref[...] = jnp.maximum(yn, LRELU_SLOPE * yn).astype(o_ref.dtype)


def conv_bn_lrelu(patches, wmat, m_true, tile_m):
    """patches: (M_pad, K) bf16, wmat: (K, Coutp) bf16, Coutp multiple of 128."""
    m_pad, k = patches.shape
    coutp = wmat.shape[1]
    assert m_pad % tile_m == 0
    n_m = m_pad // tile_m

    kernel = functools.partial(_conv_bn_lrelu_kernel, m_true=m_true, tile_m=tile_m)
    flops = 2 * (2 * m_pad * k * coutp)  # matmul is executed in both phases
    bytes_accessed = 2 * m_pad * k * 2 + k * coutp * 2 + m_pad * coutp * 2

    return pl.pallas_call(
        kernel,
        out_shape=jax.ShapeDtypeStruct((m_pad, coutp), jnp.bfloat16),
        grid_spec=pltpu.PrefetchScalarGridSpec(
            num_scalar_prefetch=0,
            grid=(2, n_m),
            in_specs=[
                pl.BlockSpec((tile_m, k), lambda ph, mi: (mi, 0)),
                pl.BlockSpec((k, coutp), lambda ph, mi: (0, 0)),   # weights stay resident
            ],
            out_specs=pl.BlockSpec((tile_m, coutp), lambda ph, mi: (mi, 0)),
            scratch_shapes=[
                pltpu.VMEM((1, coutp), jnp.float32),   # per-channel sum
                pltpu.VMEM((1, coutp), jnp.float32),   # per-channel sum of squares
            ],
        ),
        compiler_params=pltpu.CompilerParams(
            # The two-phase BN couples every M tile through the stats scratch, so both
            # axes must be sequential.  TODO(synk): a "parallel" M axis for v7x megacore
            # would need per-core stats plus a cross-core reduction.
            dimension_semantics=("arbitrary", "arbitrary"),
            vmem_limit_bytes=64 * 1024 * 1024,
        ),
        cost_estimate=pl.CostEstimate(
            flops=flops, transcendentals=0, bytes_accessed=bytes_accessed),
    )(patches, wmat)


# ---------------------------------------------------------------------------
# Kernel 2: fused tail (layers 4-6).  Spatial is 2x2 -> 1x1 -> 1x1, so each conv is an
# exact dense matmul on the flattened input; three chained dots + two BN/LeakyReLU stages
# run in a single launch, entirely in VMEM.
# ---------------------------------------------------------------------------
def _tail_kernel(x_ref, w4_ref, w5_ref, w6_ref, o_ref):
    def bn_lrelu(y):  # training-mode BatchNorm2d (stats over the batch rows) + LeakyReLU
        mean = jnp.mean(y, axis=0, keepdims=True)
        var = jnp.mean((y - mean) ** 2, axis=0, keepdims=True)
        yn = (y - mean) * jax.lax.rsqrt(var + BN_EPS)
        return jnp.maximum(yn, LRELU_SLOPE * yn)

    y4 = bn_lrelu(jnp.dot(x_ref[...], w4_ref[...], preferred_element_type=jnp.float32))
    y5 = bn_lrelu(jnp.dot(y4.astype(w5_ref.dtype), w5_ref[...],
                          preferred_element_type=jnp.float32))
    o_ref[...] = jnp.dot(y5.astype(w6_ref.dtype), w6_ref[...],
                         preferred_element_type=jnp.float32)   # final conv: no BN / act


def tail_fused(x_flat, w4m, w5m, w6m):
    n = x_flat.shape[0]
    coutp = w6m.shape[1]
    return pl.pallas_call(
        _tail_kernel,
        out_shape=jax.ShapeDtypeStruct((n, coutp), jnp.float32),
        in_specs=[pl.BlockSpec(memory_space=pltpu.MemorySpace.VMEM)] * 4,
        out_specs=pl.BlockSpec(memory_space=pltpu.MemorySpace.VMEM),
        compiler_params=pltpu.CompilerParams(vmem_limit_bytes=64 * 1024 * 1024),
    )(x_flat, w4m, w5m, w6m)


# ---------------------------------------------------------------------------
# JAX glue (layout plumbing only — all hot math is inside the two kernels above).
# ---------------------------------------------------------------------------
def im2col_nhwc(x, k=3, stride=2, pad=1):
    """NHWC -> (N*Ho*Wo, k*k*C) patches, tap-major / channel-inner rows (no transposes)."""
    n, h, w, c = x.shape
    ho = (h + 2 * pad - k) // stride + 1
    wo = (w + 2 * pad - k) // stride + 1
    xp = jnp.pad(x, ((0, 0), (pad, pad), (pad, pad), (0, 0)))
    taps = []
    for i in range(k):
        for j in range(k):
            taps.append(xp[:, i:i + stride * (ho - 1) + 1:stride,
                              j:j + stride * (wo - 1) + 1:stride, :])
    p = jnp.stack(taps, axis=3)                 # (N, Ho, Wo, k*k, C) — C stays innermost
    return p.reshape(n * ho * wo, k * k * c), ho, wo


def spectral_norm(w, u, n_iter=1, eps=1e-12):
    """torch.nn.utils.spectral_norm semantics: 1 power iteration, w / sigma."""
    cout = w.shape[0]
    wm = w.reshape(cout, -1)
    v = None
    for _ in range(n_iter):
        v = wm.T @ u
        v = v / (jnp.linalg.norm(v) + eps)
        u = wm @ v
        u = u / (jnp.linalg.norm(u) + eps)
    sigma = jnp.dot(u, wm @ v)
    return w / sigma


def init_params(key, nc, ndf=16):
    """Deterministic synthetic init: conv weights (Cout,Cin,3,3) + spectral-norm u vectors."""
    chans = [nc, ndf, ndf * 2, ndf * 4, ndf * 8, ndf * 16, 1]
    params = []
    for i in range(6):
        cin, cout = chans[i], chans[i + 1]
        key, kw, ku = jax.random.split(key, 3)
        bound = 1.0 / jnp.sqrt(cin * 9.0)  # kaiming_uniform-like bound
        w = jax.random.uniform(kw, (cout, cin, 3, 3), jnp.float32, -bound, bound)
        u = jax.random.normal(ku, (cout,), jnp.float32)
        u = u / (jnp.linalg.norm(u) + 1e-12)
        params.append((w, u))
    return params


def prepare_weights(params):
    """Spectral-norm + fold every conv into an MXU-friendly, lane-padded bf16 matrix.

    Layers 0-2: (9*Cin, Cout->128) im2col weight matrices (rows ordered (kh, kw, cin)).
    Layer 3 (2x2 -> 1x1): only taps (1,1),(1,2),(2,1),(2,2) hit real data -> (4*Cin, Cout)
        matrix acting on the flattened (h, w, c) input.
    Layers 4-5 (1x1 -> 1x1): only the center tap -> plain (Cin, Cout) matrices.
    Done once, outside the jitted forward (no per-forward weight transposes in the hot path).
    """
    # TODO(synk): PyTorch's spectral_norm updates the `u` buffer in-place each forward;
    # a single forward matches, but the updated u is not persisted here.
    mats, couts = [], []
    for idx, (w, u) in enumerate(params):
        w_sn = spectral_norm(w, u)
        cout, cin = w.shape[0], w.shape[1]
        couts.append(cout)
        if idx <= 2:
            wm = jnp.transpose(w_sn, (2, 3, 1, 0)).reshape(9 * cin, cout)
        elif idx == 3:
            wm = jnp.transpose(w_sn[:, :, 1:, 1:], (2, 3, 1, 0)).reshape(4 * cin, cout)
        else:
            wm = jnp.transpose(w_sn[:, :, 1, 1], (1, 0))
            prev_coutp = mats[-1].shape[1]          # keep zero-padded channels lined up
            if wm.shape[0] != prev_coutp:
                wm = jnp.pad(wm, ((0, prev_coutp - wm.shape[0]), (0, 0)))
        coutp = _round_up(cout, LANE)               # lane-dense output stores
        if coutp != cout:
            wm = jnp.pad(wm, ((0, 0), (0, coutp - cout)))
        mats.append(wm.astype(jnp.bfloat16))
    return mats, tuple(couts)


def _conv_layer(h, wmat, cout, *, max_tile_m=512):
    """One fused conv+BN+LeakyReLU layer on NHWC input; returns NHWC bf16."""
    n = h.shape[0]
    patches, ho, wo = im2col_nhwc(h)
    m = patches.shape[0]
    tile_m = min(max_tile_m, _round_up(m, 8))
    m_pad = _round_up(m, tile_m)
    if m_pad != m:
        patches = jnp.pad(patches, ((0, m_pad - m), (0, 0)))
    y = conv_bn_lrelu(patches, wmat, m, tile_m)        # (M_pad, Coutp) bf16
    return y[:m, :cout].reshape(n, ho, wo, cout)


def discriminator_forward(x, mats, couts):
    """x: (N, nc, H, W) float32 (NCHW like PyTorch). Returns (N,) like the torch module."""
    h = jnp.transpose(x, (0, 2, 3, 1)).astype(jnp.bfloat16)    # single NCHW->NHWC transpose
    for li in range(3):                                        # layers 1-3
        h = _conv_layer(h, mats[li], couts[li])
    n = h.shape[0]
    x_flat = h.reshape(n, -1)                                  # (N, 2*2*C3), (h, w, c) order
    out = tail_fused(x_flat, mats[3], mats[4], mats[5])        # layers 4-6 fused, (N, 128) f32
    # PyTorch: output.view(-1, 1).squeeze(1); only column 0 is the real Cout=1 channel.
    return out[:, 0]


if __name__ == "__main__":
    key = jax.random.PRNGKey(0)
    k_x, k_p = jax.random.split(key)

    # Small shapes: batch=2, nc=4 channels, 16x16 spatial, ndf=16 (zdim unused by D).
    x = jax.random.normal(k_x, (2, 4, 16, 16), dtype=jnp.float32)
    params = init_params(k_p, nc=4, ndf=16)

    mats, couts = prepare_weights(params)   # weight transform once, outside the hot path
    fwd = jax.jit(functools.partial(discriminator_forward, couts=couts))

    out = jax.block_until_ready(fwd(x, mats))
    assert out.shape == (2,), out.shape
    assert bool(jnp.all(jnp.isfinite(out))), out
    print("KERNEL_OK")
</pallas_src>

<mosaic_0001>
module attributes {stable_mosaic.version = 11 : i64} {
  func.func @_conv_bn_lrelu_kernel(%arg0: i32, %arg1: i32, %arg2: memref<128x36xbf16, #tpu.memory_space<vmem>>, %arg3: memref<36x128xbf16, #tpu.memory_space<vmem>>, %arg4: memref<128x128xbf16, #tpu.memory_space<vmem>>, %arg5: memref<1x128xf32, #tpu.memory_space<vmem>>, %arg6: memref<1x128xf32, #tpu.memory_space<vmem>>) attributes {dimension_semantics = [#tpu.dimension_semantics<arbitrary>, #tpu.dimension_semantics<arbitrary>], iteration_bounds = array<i64: 2, 1>, scalar_prefetch = 0 : i64, scratch_operands = 2 : i64, tpu.core_type = #tpu.core_type<tc>, window_params = [{transform_indices = @transform_0, window_bounds = array<i64: 128, 36>}, {pipeline_mode = #tpu.pipeline_mode<synchronous>, transform_indices = @transform_1, window_bounds = array<i64: 36, 128>}, {transform_indices = @transform_2, window_bounds = array<i64: 128, 128>}]} {
    %c0_i32 = arith.constant 0 : i32
    %0 = arith.cmpi eq, %arg0, %c0_i32 : i32
    %c0_i32_0 = arith.constant 0 : i32
    %1 = arith.cmpi eq, %arg1, %c0_i32_0 : i32
    %2 = arith.andi %0, %1 : i1
    %3 = arith.extui %2 : i1 to i32
    %c0_i32_1 = arith.constant 0 : i32
    %4 = arith.cmpi ne, %3, %c0_i32_1 : i32
    scf.if %4 {
      %cst_9 = arith.constant 0.000000e+00 : f32
      %20 = vector.broadcast %cst_9 : f32 to vector<1x128xf32>
      %c0_10 = arith.constant 0 : index
      %c0_11 = arith.constant 0 : index
      %21 = vector.load %arg5[%c0_10, %c0_11] : memref<1x128xf32, #tpu.memory_space<vmem>>, vector<1x128xf32>
      tpu.vector_store %arg5[%c0_10, %c0_11], %20 {strides = array<i32>} : memref<1x128xf32, #tpu.memory_space<vmem>>, vector<1x128xf32>,
      %cst_12 = arith.constant 0.000000e+00 : f32
      %22 = vector.broadcast %cst_12 : f32 to vector<1x128xf32>
      %c0_13 = arith.constant 0 : index
      %c0_14 = arith.constant 0 : index
      %23 = vector.load %arg6[%c0_13, %c0_14] : memref<1x128xf32, #tpu.memory_space<vmem>>, vector<1x128xf32>
      tpu.vector_store %arg6[%c0_13, %c0_14], %22 {strides = array<i32>} : memref<1x128xf32, #tpu.memory_space<vmem>>, vector<1x128xf32>,
    } else {
    }
    %c0 = arith.constant 0 : index
    %c0_2 = arith.constant 0 : index
    %5 = vector.load %arg2[%c0, %c0_2] : memref<128x36xbf16, #tpu.memory_space<vmem>>, vector<128x36xbf16>
    %c0_3 = arith.constant 0 : index
    %c0_4 = arith.constant 0 : index
    %6 = vector.load %arg3[%c0_3, %c0_4] : memref<36x128xbf16, #tpu.memory_space<vmem>>, vector<36x128xbf16>
    %cst = arith.constant dense<0.000000e+00> : vector<128x128xf32>
    %7 = tpu.matmul %5, %6, %cst {dimension_numbers = #tpu.dot_dimension_numbers<[1], [0], [0], [1], [0, 0, 1, 1], [], []>} : vector<128x36xbf16>, vector<36x128xbf16>, vector<128x128xf32> -> vector<128x128xf32>
    %c128_i32 = arith.constant 128 : i32
    %8 = arith.muli %arg1, %c128_i32 : i32
    %9 = tpu.iota {dimensions = array<i32: 0>} : vector<128x128xi32>
    %10 = vector.broadcast %8 : i32 to vector<128x128xi32>
    %11 = arith.addi %10, %9 : vector<128x128xi32>
    %c128_i32_5 = arith.constant 128 : i32
    %12 = vector.broadcast %c128_i32_5 : i32 to vector<128x128xi32>
    %13 = arith.cmpi slt, %11, %12 : vector<128x128xi32>
    %c0_i32_6 = arith.constant 0 : i32
    %14 = arith.cmpi eq, %arg0, %c0_i32_6 : i32
    %15 = arith.extui %14 : i1 to i32
    %c0_i32_7 = arith.constant 0 : i32
    %16 = arith.cmpi ne, %15, %c0_i32_7 : i32
    scf.if %16 {
      %cst_9 = arith.constant 0.000000e+00 : f32
      %20 = vector.broadcast %cst_9 : f32 to vector<128x128xf32>
      %21 = arith.select %13, %7, %20 : vector<128x128xi1>, vector<128x128xf32>
      %c0_10 = arith.constant 0 : index
      %c0_11 = arith.constant 0 : index
      %22 = vector.load %arg5[%c0_10, %c0_11] : memref<1x128xf32, #tpu.memory_space<vmem>>, vector<1x128xf32>
      %cst_12 = arith.constant dense<0.000000e+00> : vector<128xf32>
      %23 = vector.multi_reduction <add>, %21, %cst_12 [0] : vector<128x128xf32> to vector<128xf32>
      %24 = vector.shape_cast %23 : vector<128xf32> to vector<1x128xf32>
      %25 = arith.addf %22, %24 : vector<1x128xf32>
      %c0_13 = arith.constant 0 : index
      %c0_14 = arith.constant 0 : index
      %26 = vector.load %arg5[%c0_13, %c0_14] : memref<1x128xf32, #tpu.memory_space<vmem>>, vector<1x128xf32>
      tpu.vector_store %arg5[%c0_13, %c0_14], %25 {strides = array<i32>} : memref<1x128xf32, #tpu.memory_space<vmem>>, vector<1x128xf32>,
      %c0_15 = arith.constant 0 : index
      %c0_16 = arith.constant 0 : index
      %27 = vector.load %arg6[%c0_15, %c0_16] : memref<1x128xf32, #tpu.memory_space<vmem>>, vector<1x128xf32>
      %28 = arith.mulf %21, %21 : vector<128x128xf32>
      %cst_17 = arith.constant dense<0.000000e+00> : vector<128xf32>
      %29 = vector.multi_reduction <add>, %28, %cst_17 [0] : vector<128x128xf32> to vector<128xf32>
      %30 = vector.shape_cast %29 : vector<128xf32> to vector<1x128xf32>
      %31 = arith.addf %27, %30 : vector<1x128xf32>
      %c0_18 = arith.constant 0 : index
      %c0_19 = arith.constant 0 : index
      %32 = vector.load %arg6[%c0_18, %c0_19] : memref<1x128xf32, #tpu.memory_space<vmem>>, vector<1x128xf32>
      tpu.vector_store %arg6[%c0_18, %c0_19], %31 {strides = array<i32>} : memref<1x128xf32, #tpu.memory_space<vmem>>, vector<1x128xf32>,
    } else {
    }
    %c1_i32 = arith.constant 1 : i32
    %17 = arith.cmpi eq, %arg0, %c1_i32 : i32
    %18 = arith.extui %17 : i1 to i32
    %c0_i32_8 = arith.constant 0 : i32
    %19 = arith.cmpi ne, %18, %c0_i32_8 : i32
    scf.if %19 {
      %c0_9 = arith.constant 0 : index
      %c0_10 = arith.constant 0 : index
      %20 = vector.load %arg5[%c0_9, %c0_10] : memref<1x128xf32, #tpu.memory_space<vmem>>, vector<1x128xf32>
      %cst_11 = arith.constant 7.812500e-03 : f32
      %21 = vector.broadcast %cst_11 : f32 to vector<1x128xf32>
      %22 = arith.mulf %20, %21 : vector<1x128xf32>
      %c0_12 = arith.constant 0 : index
      %c0_13 = arith.constant 0 : index
      %23 = vector.load %arg6[%c0_12, %c0_13] : memref<1x128xf32, #tpu.memory_space<vmem>>, vector<1x128xf32>
      %cst_14 = arith.constant 7.812500e-03 : f32
      %24 = vector.broadcast %cst_14 : f32 to vector<1x128xf32>
      %25 = arith.mulf %23, %24 : vector<1x128xf32>
      %26 = arith.mulf %22, %22 : vector<1x128xf32>
      %27 = arith.subf %25, %26 : vector<1x128xf32>
      %cst_15 = arith.constant 0.000000e+00 : f32
      %28 = vector.broadcast %cst_15 : f32 to vector<1x128xf32>
      %29 = arith.maximumf %27, %28 : vector<1x128xf32>
      %30 = vector.broadcast %22 : vector<1x128xf32> to vector<128x128xf32>
      %31 = arith.subf %7, %30 : vector<128x128xf32>
      %cst_16 = arith.constant 9.99999974E-6 : f32
      %32 = vector.broadcast %cst_16 : f32 to vector<1x128xf32>
      %33 = arith.addf %29, %32 : vector<1x128xf32>
      %34 = math.rsqrt %33 : vector<1x128xf32>
      %35 = vector.broadcast %34 : vector<1x128xf32> to vector<128x128xf32>
      %36 = arith.mulf %31, %35 : vector<128x128xf32>
      %cst_17 = arith.constant 2.000000e-01 : f32
      %37 = vector.broadcast %cst_17 : f32 to vector<128x128xf32>
      %38 = arith.mulf %37, %36 : vector<128x128xf32>
      %39 = arith.maximumf %36, %38 : vector<128x128xf32>
      %40 = arith.truncf %39 : vector<128x128xf32> to vector<128x128xbf16>
      %c0_18 = arith.constant 0 : index
      %c0_19 = arith.constant 0 : index
      %41 = vector.load %arg4[%c0_18, %c0_19] : memref<128x128xbf16, #tpu.memory_space<vmem>>, vector<128x128xbf16>
      tpu.vector_store %arg4[%c0_18, %c0_19], %40 {strides = array<i32>} : memref<128x128xbf16, #tpu.memory_space<vmem>>, vector<128x128xbf16>,
    } else {
    }
    return
  }
  func.func @transform_0(%arg0: i32, %arg1: i32) -> (i32, i32) {
    %c0_i32 = arith.constant 0 : i32
    %c0_i32_0 = arith.constant 0 : i32
    return %arg1, %c0_i32 : i32, i32
  }
  func.func @transform_1(%arg0: i32, %arg1: i32) -> (i32, i32) {
    %c0_i32 = arith.constant 0 : i32
    %c0_i32_0 = arith.constant 0 : i32
    %c0_i32_1 = arith.constant 0 : i32
    return %c0_i32, %c0_i32_0 : i32, i32
  }
  func.func @transform_2(%arg0: i32, %arg1: i32) -> (i32, i32) {
    %c0_i32 = arith.constant 0 : i32
    %c0_i32_0 = arith.constant 0 : i32
    return %arg1, %c0_i32 : i32, i32
  }
}

module attributes {stable_mosaic.version = 11 : i64} {
  func.func @_conv_bn_lrelu_kernel(%arg0: i32, %arg1: i32, %arg2: memref<32x144xbf16, #tpu.memory_space<vmem>>, %arg3: memref<144x128xbf16, #tpu.memory_space<vmem>>, %arg4: memref<32x128xbf16, #tpu.memory_space<vmem>>, %arg5: memref<1x128xf32, #tpu.memory_space<vmem>>, %arg6: memref<1x128xf32, #tpu.memory_space<vmem>>) attributes {dimension_semantics = [#tpu.dimension_semantics<arbitrary>, #tpu.dimension_semantics<arbitrary>], iteration_bounds = array<i64: 2, 1>, scalar_prefetch = 0 : i64, scratch_operands = 2 : i64, tpu.core_type = #tpu.core_type<tc>, window_params = [{transform_indices = @transform_0, window_bounds = array<i64: 32, 144>}, {pipeline_mode = #tpu.pipeline_mode<synchronous>, transform_indices = @transform_1, window_bounds = array<i64: 144, 128>}, {transform_indices = @transform_2, window_bounds = array<i64: 32, 128>}]} {
    %c0_i32 = arith.constant 0 : i32
    %0 = arith.cmpi eq, %arg0, %c0_i32 : i32
    %c0_i32_0 = arith.constant 0 : i32
    %1 = arith.cmpi eq, %arg1, %c0_i32_0 : i32
    %2 = arith.andi %0, %1 : i1
    %3 = arith.extui %2 : i1 to i32
    %c0_i32_1 = arith.constant 0 : i32
    %4 = arith.cmpi ne, %3, %c0_i32_1 : i32
    scf.if %4 {
      %cst_9 = arith.constant 0.000000e+00 : f32
      %20 = vector.broadcast %cst_9 : f32 to vector<1x128xf32>
      %c0_10 = arith.constant 0 : index
      %c0_11 = arith.constant 0 : index
      %21 = vector.load %arg5[%c0_10, %c0_11] : memref<1x128xf32, #tpu.memory_space<vmem>>, vector<1x128xf32>
      tpu.vector_store %arg5[%c0_10, %c0_11], %20 {strides = array<i32>} : memref<1x128xf32, #tpu.memory_space<vmem>>, vector<1x128xf32>,
      %cst_12 = arith.constant 0.000000e+00 : f32
      %22 = vector.broadcast %cst_12 : f32 to vector<1x128xf32>
      %c0_13 = arith.constant 0 : index
      %c0_14 = arith.constant 0 : index
      %23 = vector.load %arg6[%c0_13, %c0_14] : memref<1x128xf32, #tpu.memory_space<vmem>>, vector<1x128xf32>
      tpu.vector_store %arg6[%c0_13, %c0_14], %22 {strides = array<i32>} : memref<1x128xf32, #tpu.memory_space<vmem>>, vector<1x128xf32>,
    } else {
    }
    %c0 = arith.constant 0 : index
    %c0_2 = arith.constant 0 : index
    %5 = vector.load %arg2[%c0, %c0_2] : memref<32x144xbf16, #tpu.memory_space<vmem>>, vector<32x144xbf16>
    %c0_3 = arith.constant 0 : index
    %c0_4 = arith.constant 0 : index
    %6 = vector.load %arg3[%c0_3, %c0_4] : memref<144x128xbf16, #tpu.memory_space<vmem>>, vector<144x128xbf16>
    %cst = arith.constant dense<0.000000e+00> : vector<32x128xf32>
    %7 = tpu.matmul %5, %6, %cst {dimension_numbers = #tpu.dot_dimension_numbers<[1], [0], [0], [1], [0, 0, 1, 1], [], []>} : vector<32x144xbf16>, vector<144x128xbf16>, vector<32x128xf32> -> vector<32x128xf32>
    %c32_i32 = arith.constant 32 : i32
    %8 = arith.muli %arg1, %c32_i32 : i32
    %9 = tpu.iota {dimensions = array<i32: 0>} : vector<32x128xi32>
    %10 = vector.broadcast %8 : i32 to vector<32x128xi32>
    %11 = arith.addi %10, %9 : vector<32x128xi32>
    %c32_i32_5 = arith.constant 32 : i32
    %12 = vector.broadcast %c32_i32_5 : i32 to vector<32x128xi32>
    %13 = arith.cmpi slt, %11, %12 : vector<32x128xi32>
    %c0_i32_6 = arith.constant 0 : i32
    %14 = arith.cmpi eq, %arg0, %c0_i32_6 : i32
    %15 = arith.extui %14 : i1 to i32
    %c0_i32_7 = arith.constant 0 : i32
    %16 = arith.cmpi ne, %15, %c0_i32_7 : i32
    scf.if %16 {
      %cst_9 = arith.constant 0.000000e+00 : f32
      %20 = vector.broadcast %cst_9 : f32 to vector<32x128xf32>
      %21 = arith.select %13, %7, %20 : vector<32x128xi1>, vector<32x128xf32>
      %c0_10 = arith.constant 0 : index
      %c0_11 = arith.constant 0 : index
      %22 = vector.load %arg5[%c0_10, %c0_11] : memref<1x128xf32, #tpu.memory_space<vmem>>, vector<1x128xf32>
      %cst_12 = arith.constant dense<0.000000e+00> : vector<128xf32>
      %23 = vector.multi_reduction <add>, %21, %cst_12 [0] : vector<32x128xf32> to vector<128xf32>
      %24 = vector.shape_cast %23 : vector<128xf32> to vector<1x128xf32>
      %25 = arith.addf %22, %24 : vector<1x128xf32>
      %c0_13 = arith.constant 0 : index
      %c0_14 = arith.constant 0 : index
      %26 = vector.load %arg5[%c0_13, %c0_14] : memref<1x128xf32, #tpu.memory_space<vmem>>, vector<1x128xf32>
      tpu.vector_store %arg5[%c0_13, %c0_14], %25 {strides = array<i32>} : memref<1x128xf32, #tpu.memory_space<vmem>>, vector<1x128xf32>,
      %c0_15 = arith.constant 0 : index
      %c0_16 = arith.constant 0 : index
      %27 = vector.load %arg6[%c0_15, %c0_16] : memref<1x128xf32, #tpu.memory_space<vmem>>, vector<1x128xf32>
      %28 = arith.mulf %21, %21 : vector<32x128xf32>
      %cst_17 = arith.constant dense<0.000000e+00> : vector<128xf32>
      %29 = vector.multi_reduction <add>, %28, %cst_17 [0] : vector<32x128xf32> to vector<128xf32>
      %30 = vector.shape_cast %29 : vector<128xf32> to vector<1x128xf32>
      %31 = arith.addf %27, %30 : vector<1x128xf32>
      %c0_18 = arith.constant 0 : index
      %c0_19 = arith.constant 0 : index
      %32 = vector.load %arg6[%c0_18, %c0_19] : memref<1x128xf32, #tpu.memory_space<vmem>>, vector<1x128xf32>
      tpu.vector_store %arg6[%c0_18, %c0_19], %31 {strides = array<i32>} : memref<1x128xf32, #tpu.memory_space<vmem>>, vector<1x128xf32>,
    } else {
    }
    %c1_i32 = arith.constant 1 : i32
    %17 = arith.cmpi eq, %arg0, %c1_i32 : i32
    %18 = arith.extui %17 : i1 to i32
    %c0_i32_8 = arith.constant 0 : i32
    %19 = arith.cmpi ne, %18, %c0_i32_8 : i32
    scf.if %19 {
      %c0_9 = arith.constant 0 : index
      %c0_10 = arith.constant 0 : index
      %20 = vector.load %arg5[%c0_9, %c0_10] : memref<1x128xf32, #tpu.memory_space<vmem>>, vector<1x128xf32>
      %cst_11 = arith.constant 3.125000e-02 : f32
      %21 = vector.broadcast %cst_11 : f32 to vector<1x128xf32>
      %22 = arith.mulf %20, %21 : vector<1x128xf32>
      %c0_12 = arith.constant 0 : index
      %c0_13 = arith.constant 0 : index
      %23 = vector.load %arg6[%c0_12, %c0_13] : memref<1x128xf32, #tpu.memory_space<vmem>>, vector<1x128xf32>
      %cst_14 = arith.constant 3.125000e-02 : f32
      %24 = vector.broadcast %cst_14 : f32 to vector<1x128xf32>
      %25 = arith.mulf %23, %24 : vector<1x128xf32>
      %26 = arith.mulf %22, %22 : vector<1x128xf32>
      %27 = arith.subf %25, %26 : vector<1x128xf32>
      %cst_15 = arith.constant 0.000000e+00 : f32
      %28 = vector.broadcast %cst_15 : f32 to vector<1x128xf32>
      %29 = arith.maximumf %27, %28 : vector<1x128xf32>
      %30 = vector.broadcast %22 : vector<1x128xf32> to vector<32x128xf32>
      %31 = arith.subf %7, %30 : vector<32x128xf32>
      %cst_16 = arith.constant 9.99999974E-6 : f32
      %32 = vector.broadcast %cst_16 : f32 to vector<1x128xf32>
      %33 = arith.addf %29, %32 : vector<1x128xf32>
      %34 = math.rsqrt %33 : vector<1x128xf32>
      %35 = vector.broadcast %34 : vector<1x128xf32> to vector<32x128xf32>
      %36 = arith.mulf %31, %35 : vector<32x128xf32>
      %cst_17 = arith.constant 2.000000e-01 : f32
      %37 = vector.broadcast %cst_17 : f32 to vector<32x128xf32>
      %38 = arith.mulf %37, %36 : vector<32x128xf32>
      %39 = arith.maximumf %36, %38 : vector<32x128xf32>
      %40 = arith.truncf %39 : vector<32x128xf32> to vector<32x128xbf16>
      %c0_18 = arith.constant 0 : index
      %c0_19 = arith.constant 0 : index
      %41 = vector.load %arg4[%c0_18, %c0_19] : memref<32x128xbf16, #tpu.memory_space<vmem>>, vector<32x128xbf16>
      tpu.vector_store %arg4[%c0_18, %c0_19], %40 {strides = array<i32>} : memref<32x128xbf16, #tpu.memory_space<vmem>>, vector<32x128xbf16>,
    } else {
    }
    return
  }
  func.func @transform_0(%arg0: i32, %arg1: i32) -> (i32, i32) {
    %c0_i32 = arith.constant 0 : i32
    %c0_i32_0 = arith.constant 0 : i32
    return %arg1, %c0_i32 : i32, i32
  }
  func.func @transform_1(%arg0: i32, %arg1: i32) -> (i32, i32) {
    %c0_i32 = arith.constant 0 : i32
    %c0_i32_0 = arith.constant 0 : i32
    %c0_i32_1 = arith.constant 0 : i32
    return %c0_i32, %c0_i32_0 : i32, i32
  }
  func.func @transform_2(%arg0: i32, %arg1: i32) -> (i32, i32) {
    %c0_i32 = arith.constant 0 : i32
    %c0_i32_0 = arith.constant 0 : i32
    return %arg1, %c0_i32 : i32, i32
  }
}

module attributes {stable_mosaic.version = 11 : i64} {
  func.func @_tail_kernel(%arg0: memref<2x256xbf16, #tpu.memory_space<vmem>>, %arg1: memref<256x128xbf16, #tpu.memory_space<vmem>>, %arg2: memref<128x256xbf16, #tpu.memory_space<vmem>>, %arg3: memref<256x128xbf16, #tpu.memory_space<vmem>>, %arg4: memref<2x128xf32, #tpu.memory_space<vmem>>) attributes {dimension_semantics = [], scalar_prefetch = 0 : i64, scratch_operands = 0 : i64, tpu.core_type = #tpu.core_type<tc>} {
    %c0 = arith.constant 0 : index
    %c0_0 = arith.constant 0 : index
    %0 = vector.load %arg0[%c0, %c0_0] : memref<2x256xbf16, #tpu.memory_space<vmem>>, vector<2x256xbf16>
    %c0_1 = arith.constant 0 : index
    %c0_2 = arith.constant 0 : index
    %1 = vector.load %arg1[%c0_1, %c0_2] : memref<256x128xbf16, #tpu.memory_space<vmem>>, vector<256x128xbf16>
    %cst = arith.constant dense<0.000000e+00> : vector<2x128xf32>
    %2 = tpu.matmul %0, %1, %cst {dimension_numbers = #tpu.dot_dimension_numbers<[1], [0], [0], [1], [0, 0, 1, 1], [], []>} : vector<2x256xbf16>, vector<256x128xbf16>, vector<2x128xf32> -> vector<2x128xf32>
    %cst_3 = arith.constant dense<0.000000e+00> : vector<128xf32>
    %3 = vector.multi_reduction <add>, %2, %cst_3 [0] : vector<2x128xf32> to vector<128xf32>
    %4 = vector.shape_cast %3 : vector<128xf32> to vector<1x128xf32>
    %cst_4 = arith.constant 2.000000e+00 : f32
    %5 = vector.broadcast %cst_4 : f32 to vector<1x128xf32>
    %6 = arith.divf %4, %5 : vector<1x128xf32>
    %7 = vector.broadcast %6 : vector<1x128xf32> to vector<2x128xf32>
    %8 = arith.subf %2, %7 : vector<2x128xf32>
    %9 = arith.mulf %8, %8 : vector<2x128xf32>
    %cst_5 = arith.constant dense<0.000000e+00> : vector<128xf32>
    %10 = vector.multi_reduction <add>, %9, %cst_5 [0] : vector<2x128xf32> to vector<128xf32>
    %11 = vector.shape_cast %10 : vector<128xf32> to vector<1x128xf32>
    %cst_6 = arith.constant 2.000000e+00 : f32
    %12 = vector.broadcast %cst_6 : f32 to vector<1x128xf32>
    %13 = arith.divf %11, %12 : vector<1x128xf32>
    %14 = vector.broadcast %6 : vector<1x128xf32> to vector<2x128xf32>
    %15 = arith.subf %2, %14 : vector<2x128xf32>
    %cst_7 = arith.constant 9.99999974E-6 : f32
    %16 = vector.broadcast %cst_7 : f32 to vector<1x128xf32>
    %17 = arith.addf %13, %16 : vector<1x128xf32>
    %18 = math.rsqrt %17 : vector<1x128xf32>
    %19 = vector.broadcast %18 : vector<1x128xf32> to vector<2x128xf32>
    %20 = arith.mulf %15, %19 : vector<2x128xf32>
    %cst_8 = arith.constant 2.000000e-01 : f32
    %21 = vector.broadcast %cst_8 : f32 to vector<2x128xf32>
    %22 = arith.mulf %21, %20 : vector<2x128xf32>
    %23 = arith.maximumf %20, %22 : vector<2x128xf32>
    %24 = arith.truncf %23 : vector<2x128xf32> to vector<2x128xbf16>
    %c0_9 = arith.constant 0 : index
    %c0_10 = arith.constant 0 : index
    %25 = vector.load %arg2[%c0_9, %c0_10] : memref<128x256xbf16, #tpu.memory_space<vmem>>, vector<128x256xbf16>
    %cst_11 = arith.constant dense<0.000000e+00> : vector<2x256xf32>
    %26 = tpu.matmul %24, %25, %cst_11 {dimension_numbers = #tpu.dot_dimension_numbers<[1], [0], [0], [1], [0, 0, 1, 1], [], []>} : vector<2x128xbf16>, vector<128x256xbf16>, vector<2x256xf32> -> vector<2x256xf32>
    %cst_12 = arith.constant dense<0.000000e+00> : vector<256xf32>
    %27 = vector.multi_reduction <add>, %26, %cst_12 [0] : vector<2x256xf32> to vector<256xf32>
    %28 = vector.shape_cast %27 : vector<256xf32> to vector<1x256xf32>
    %cst_13 = arith.constant 2.000000e+00 : f32
    %29 = vector.broadcast %cst_13 : f32 to vector<1x256xf32>
    %30 = arith.divf %28, %29 : vector<1x256xf32>
    %31 = vector.broadcast %30 : vector<1x256xf32> to vector<2x256xf32>
    %32 = arith.subf %26, %31 : vector<2x256xf32>
    %33 = arith.mulf %32, %32 : vector<2x256xf32>
    %cst_14 = arith.constant dense<0.000000e+00> : vector<256xf32>
    %34 = vector.multi_reduction <add>, %33, %cst_14 [0] : vector<2x256xf32> to vector<256xf32>
    %35 = vector.shape_cast %34 : vector<256xf32> to vector<1x256xf32>
    %cst_15 = arith.constant 2.000000e+00 : f32
    %36 = vector.broadcast %cst_15 : f32 to vector<1x256xf32>
    %37 = arith.divf %35, %36 : vector<1x256xf32>
    %38 = vector.broadcast %30 : vector<1x256xf32> to vector<2x256xf32>
    %39 = arith.subf %26, %38 : vector<2x256xf32>
    %cst_16 = arith.constant 9.99999974E-6 : f32
    %40 = vector.broadcast %cst_16 : f32 to vector<1x256xf32>
    %41 = arith.addf %37, %40 : vector<1x256xf32>
    %42 = math.rsqrt %41 : vector<1x256xf32>
    %43 = vector.broadcast %42 : vector<1x256xf32> to vector<2x256xf32>
    %44 = arith.mulf %39, %43 : vector<2x256xf32>
    %cst_17 = arith.constant 2.000000e-01 : f32
    %45 = vector.broadcast %cst_17 : f32 to vector<2x256xf32>
    %46 = arith.mulf %45, %44 : vector<2x256xf32>
    %47 = arith.maximumf %44, %46 : vector<2x256xf32>
    %48 = arith.truncf %47 : vector<2x256xf32> to vector<2x256xbf16>
    %c0_18 = arith.constant 0 : index
    %c0_19 = arith.constant 0 : index
    %49 = vector.load %arg3[%c0_18, %c0_19] : memref<256x128xbf16, #tpu.memory_space<vmem>>, vector<256x128xbf16>
    %cst_20 = arith.constant dense<0.000000e+00> : vector<2x128xf32>
    %50 = tpu.matmul %48, %49, %cst_20 {dimension_numbers = #tpu.dot_dimension_numbers<[1], [0], [0], [1], [0, 0, 1, 1], [], []>} : vector<2x256xbf16>, vector<256x128xbf16>, vector<2x128xf32> -> vector<2x128xf32>
    %c0_21 = arith.constant 0 : index
    %c0_22 = arith.constant 0 : index
    %51 = vector.load %arg4[%c0_21, %c0_22] : memref<2x128xf32, #tpu.memory_space<vmem>>, vector<2x128xf32>
    tpu.vector_store %arg4[%c0_21, %c0_22], %50 {strides = array<i32>} : memref<2x128xf32, #tpu.memory_space<vmem>>, vector<2x128xf32>,
    return
  }
}

module attributes {stable_mosaic.version = 11 : i64} {
  func.func @_conv_bn_lrelu_kernel(%arg0: i32, %arg1: i32, %arg2: memref<8x288xbf16, #tpu.memory_space<vmem>>, %arg3: memref<288x128xbf16, #tpu.memory_space<vmem>>, %arg4: memref<8x128xbf16, #tpu.memory_space<vmem>>, %arg5: memref<1x128xf32, #tpu.memory_space<vmem>>, %arg6: memref<1x128xf32, #tpu.memory_space<vmem>>) attributes {dimension_semantics = [#tpu.dimension_semantics<arbitrary>, #tpu.dimension_semantics<arbitrary>], iteration_bounds = array<i64: 2, 1>, scalar_prefetch = 0 : i64, scratch_operands = 2 : i64, tpu.core_type = #tpu.core_type<tc>, window_params = [{transform_indices = @transform_0, window_bounds = array<i64: 8, 288>}, {pipeline_mode = #tpu.pipeline_mode<synchronous>, transform_indices = @transform_1, window_bounds = array<i64: 288, 128>}, {transform_indices = @transform_2, window_bounds = array<i64: 8, 128>}]} {
    %c0_i32 = arith.constant 0 : i32
    %0 = arith.cmpi eq, %arg0, %c0_i32 : i32
    %c0_i32_0 = arith.constant 0 : i32
    %1 = arith.cmpi eq, %arg1, %c0_i32_0 : i32
    %2 = arith.andi %0, %1 : i1
    %3 = arith.extui %2 : i1 to i32
    %c0_i32_1 = arith.constant 0 : i32
    %4 = arith.cmpi ne, %3, %c0_i32_1 : i32
    scf.if %4 {
      %cst_9 = arith.constant 0.000000e+00 : f32
      %20 = vector.broadcast %cst_9 : f32 to vector<1x128xf32>
      %c0_10 = arith.constant 0 : index
      %c0_11 = arith.constant 0 : index
      %21 = vector.load %arg5[%c0_10, %c0_11] : memref<1x128xf32, #tpu.memory_space<vmem>>, vector<1x128xf32>
      tpu.vector_store %arg5[%c0_10, %c0_11], %20 {strides = array<i32>} : memref<1x128xf32, #tpu.memory_space<vmem>>, vector<1x128xf32>,
      %cst_12 = arith.constant 0.000000e+00 : f32
      %22 = vector.broadcast %cst_12 : f32 to vector<1x128xf32>
      %c0_13 = arith.constant 0 : index
      %c0_14 = arith.constant 0 : index
      %23 = vector.load %arg6[%c0_13, %c0_14] : memref<1x128xf32, #tpu.memory_space<vmem>>, vector<1x128xf32>
      tpu.vector_store %arg6[%c0_13, %c0_14], %22 {strides = array<i32>} : memref<1x128xf32, #tpu.memory_space<vmem>>, vector<1x128xf32>,
    } else {
    }
    %c0 = arith.constant 0 : index
    %c0_2 = arith.constant 0 : index
    %5 = vector.load %arg2[%c0, %c0_2] : memref<8x288xbf16, #tpu.memory_space<vmem>>, vector<8x288xbf16>
    %c0_3 = arith.constant 0 : index
    %c0_4 = arith.constant 0 : index
    %6 = vector.load %arg3[%c0_3, %c0_4] : memref<288x128xbf16, #tpu.memory_space<vmem>>, vector<288x128xbf16>
    %cst = arith.constant dense<0.000000e+00> : vector<8x128xf32>
    %7 = tpu.matmul %5, %6, %cst {dimension_numbers = #tpu.dot_dimension_numbers<[1], [0], [0], [1], [0, 0, 1, 1], [], []>} : vector<8x288xbf16>, vector<288x128xbf16>, vector<8x128xf32> -> vector<8x128xf32>
    %c8_i32 = arith.constant 8 : i32
    %8 = arith.muli %arg1, %c8_i32 : i32
    %9 = tpu.iota {dimensions = array<i32: 0>} : vector<8x128xi32>
    %10 = vector.broadcast %8 : i32 to vector<8x128xi32>
    %11 = arith.addi %10, %9 : vector<8x128xi32>
    %c8_i32_5 = arith.constant 8 : i32
    %12 = vector.broadcast %c8_i32_5 : i32 to vector<8x128xi32>
    %13 = arith.cmpi slt, %11, %12 : vector<8x128xi32>
    %c0_i32_6 = arith.constant 0 : i32
    %14 = arith.cmpi eq, %arg0, %c0_i32_6 : i32
    %15 = arith.extui %14 : i1 to i32
    %c0_i32_7 = arith.constant 0 : i32
    %16 = arith.cmpi ne, %15, %c0_i32_7 : i32
    scf.if %16 {
      %cst_9 = arith.constant 0.000000e+00 : f32
      %20 = vector.broadcast %cst_9 : f32 to vector<8x128xf32>
      %21 = arith.select %13, %7, %20 : vector<8x128xi1>, vector<8x128xf32>
      %c0_10 = arith.constant 0 : index
      %c0_11 = arith.constant 0 : index
      %22 = vector.load %arg5[%c0_10, %c0_11] : memref<1x128xf32, #tpu.memory_space<vmem>>, vector<1x128xf32>
      %cst_12 = arith.constant dense<0.000000e+00> : vector<128xf32>
      %23 = vector.multi_reduction <add>, %21, %cst_12 [0] : vector<8x128xf32> to vector<128xf32>
      %24 = vector.shape_cast %23 : vector<128xf32> to vector<1x128xf32>
      %25 = arith.addf %22, %24 : vector<1x128xf32>
      %c0_13 = arith.constant 0 : index
      %c0_14 = arith.constant 0 : index
      %26 = vector.load %arg5[%c0_13, %c0_14] : memref<1x128xf32, #tpu.memory_space<vmem>>, vector<1x128xf32>
      tpu.vector_store %arg5[%c0_13, %c0_14], %25 {strides = array<i32>} : memref<1x128xf32, #tpu.memory_space<vmem>>, vector<1x128xf32>,
      %c0_15 = arith.constant 0 : index
      %c0_16 = arith.constant 0 : index
      %27 = vector.load %arg6[%c0_15, %c0_16] : memref<1x128xf32, #tpu.memory_space<vmem>>, vector<1x128xf32>
      %28 = arith.mulf %21, %21 : vector<8x128xf32>
      %cst_17 = arith.constant dense<0.000000e+00> : vector<128xf32>
      %29 = vector.multi_reduction <add>, %28, %cst_17 [0] : vector<8x128xf32> to vector<128xf32>
      %30 = vector.shape_cast %29 : vector<128xf32> to vector<1x128xf32>
      %31 = arith.addf %27, %30 : vector<1x128xf32>
      %c0_18 = arith.constant 0 : index
      %c0_19 = arith.constant 0 : index
      %32 = vector.load %arg6[%c0_18, %c0_19] : memref<1x128xf32, #tpu.memory_space<vmem>>, vector<1x128xf32>
      tpu.vector_store %arg6[%c0_18, %c0_19], %31 {strides = array<i32>} : memref<1x128xf32, #tpu.memory_space<vmem>>, vector<1x128xf32>,
    } else {
    }
    %c1_i32 = arith.constant 1 : i32
    %17 = arith.cmpi eq, %arg0, %c1_i32 : i32
    %18 = arith.extui %17 : i1 to i32
    %c0_i32_8 = arith.constant 0 : i32
    %19 = arith.cmpi ne, %18, %c0_i32_8 : i32
    scf.if %19 {
      %c0_9 = arith.constant 0 : index
      %c0_10 = arith.constant 0 : index
      %20 = vector.load %arg5[%c0_9, %c0_10] : memref<1x128xf32, #tpu.memory_space<vmem>>, vector<1x128xf32>
      %cst_11 = arith.constant 1.250000e-01 : f32
      %21 = vector.broadcast %cst_11 : f32 to vector<1x128xf32>
      %22 = arith.mulf %20, %21 : vector<1x128xf32>
      %c0_12 = arith.constant 0 : index
      %c0_13 = arith.constant 0 : index
      %23 = vector.load %arg6[%c0_12, %c0_13] : memref<1x128xf32, #tpu.memory_space<vmem>>, vector<1x128xf32>
      %cst_14 = arith.constant 1.250000e-01 : f32
      %24 = vector.broadcast %cst_14 : f32 to vector<1x128xf32>
      %25 = arith.mulf %23, %24 : vector<1x128xf32>
      %26 = arith.mulf %22, %22 : vector<1x128xf32>
      %27 = arith.subf %25, %26 : vector<1x128xf32>
      %cst_15 = arith.constant 0.000000e+00 : f32
      %28 = vector.broadcast %cst_15 : f32 to vector<1x128xf32>
      %29 = arith.maximumf %27, %28 : vector<1x128xf32>
      %30 = vector.broadcast %22 : vector<1x128xf32> to vector<8x128xf32>
      %31 = arith.subf %7, %30 : vector<8x128xf32>
      %cst_16 = arith.constant 9.99999974E-6 : f32
      %32 = vector.broadcast %cst_16 : f32 to vector<1x128xf32>
      %33 = arith.addf %29, %32 : vector<1x128xf32>
      %34 = math.rsqrt %33 : vector<1x128xf32>
      %35 = vector.broadcast %34 : vector<1x128xf32> to vector<8x128xf32>
      %36 = arith.mulf %31, %35 : vector<8x128xf32>
      %cst_17 = arith.constant 2.000000e-01 : f32
      %37 = vector.broadcast %cst_17 : f32 to vector<8x128xf32>
      %38 = arith.mulf %37, %36 : vector<8x128xf32>
      %39 = arith.maximumf %36, %38 : vector<8x128xf32>
      %40 = arith.truncf %39 : vector<8x128xf32> to vector<8x128xbf16>
      %c0_18 = arith.constant 0 : index
      %c0_19 = arith.constant 0 : index
      %41 = vector.load %arg4[%c0_18, %c0_19] : memref<8x128xbf16, #tpu.memory_space<vmem>>, vector<8x128xbf16>
      tpu.vector_store %arg4[%c0_18, %c0_19], %40 {strides = array<i32>} : memref<8x128xbf16, #tpu.memory_space<vmem>>, vector<8x128xbf16>,
    } else {
    }
    return
  }
  func.func @transform_0(%arg0: i32, %arg1: i32) -> (i32, i32) {
    %c0_i32 = arith.constant 0 : i32
    %c0_i32_0 = arith.constant 0 : i32
    return %arg1, %c0_i32 : i32, i32
  }
  func.func @transform_1(%arg0: i32, %arg1: i32) -> (i32, i32) {
    %c0_i32 = arith.constant 0 : i32
    %c0_i32_0 = arith.constant 0 : i32
    %c0_i32_1 = arith.constant 0 : i32
    return %c0_i32, %c0_i32_0 : i32, i32
  }
  func.func @transform_2(%arg0: i32, %arg1: i32) -> (i32, i32) {
    %c0_i32 = arith.constant 0 : i32
    %c0_i32_0 = arith.constant 0 : i32
    return %arg1, %c0_i32 : i32, i32
  }
}

</mosaic_0001>

<llo_original>
// kernel: discriminator_forward.4
$region0: #{discriminator_forward.4}
  #allocation0 [shape = 'u32[]', space=smem, size = 0x4, offset = 0x4, fixed_abs, tag = 'smem constant byte address 0x4 - core index']
  #allocation1 [shape = 'u32[144,128]{1,0:T(1,128)}', space=vmem, size = 0x12000, scoped, tag = 'internal scratch']
  #allocation2 [shape = 'f32[1,128]{1,0:T(1,128)}', space=vmem, size = 0x200, scoped, tag = 'scratch operand']
  #allocation3 [shape = 'f32[1,128]{1,0:T(1,128)}', space=vmem, size = 0x200, scoped, tag = 'scratch operand']
  %s0 = inlined_call_operand.hbm [shape: bf16[128,36], index: 0, kind: input, shape index: {}]
  %s1 = inlined_call_operand.hbm [shape: bf16[36,128], index: 1, kind: input, shape index: {}]
  %s2 = inlined_call_operand.hbm [shape: bf16[128,128], index: 2, kind: output, shape index: {}]
  %s3 = sld [smem:[#allocation0]]
  $region61: #{discriminator_forward.4} parent=0
    _
  %s5 = ssub.s32 1, %s3
  %s6 = scalar_select 0, %s5, %s3
  $region1: #{discriminator_forward.4} parent=0
    #allocation4 [shape = 'u8[32768]{0}', space=vmem, size = 0x8000, scoped, tag = 'input window, operand 0, single buffered']
    #allocation5 [shape = 's32[2]{0}', space=sflag, size = 0x8, scoped, tag = 'scoped memory for discriminator_forward.4']
    #allocation6 [shape = 's32[2]{0}', space=sflag, size = 0x8, scoped, tag = 'scoped memory for discriminator_forward.4']
    #allocation7 [shape = 'u8[10240]{0}', space=vmem, size = 0x2800, scoped, tag = 'input window, operand 1, single buffered']
    #allocation8 [shape = 's32[1]{0}', space=sflag, size = 0x4, scoped, tag = 'scoped memory for discriminator_forward.4']
    #allocation9 [shape = 'u8[32768]{0}', space=vmem, size = 0x8000, scoped, tag = 'output window, operand 0, single buffered']
    %7 = vsyncpa [#allocation5], 0
    %8 = vsyncpa [#allocation8], 0
    %9 = vsyncpa [#allocation6], 0
    loop: start=0, step=1, limit=4
    $region2: #{discriminator_forward.4} parent=1 // loop_pre_header
      _
    $region3: #{discriminator_forward.4} parent=1 // loop_header
      %s11 = sphi 0, %s15
      %p12 = scmp.ge.s32.totalorder %s11, 4
      %s18 = sphi 0, %s30
      %s19 = sphi 0, %s26
      %s20 = sphi 0, %s18
      %s21 = sphi 0, %s19
      %s22 = sphi 0, %s20
      %s23 = sphi 0, %s21
      %s33 = sphi 0, %s35
      %s36 = sphi 0, %s33
      %s37 = sphi 0, %s36
      %s53 = sphi 0, %s37
      %s57 = sphi 0, %s57
      %s59 = sphi 0, %s57
      %s60 = sphi 0, %s59
      %s74 = sphi 0, %s60
      %s80 = sphi 0, %s82
      %s83 = sphi 0, %s80
      %s84 = sphi 0, %s83
      %s100 = sphi 0, %s84
    $region4: #{discriminator_forward.4} parent=1 // loop_header_branch
      %14 = sbr.rel (%p12) target = $region8
    $region5: #{discriminator_forward.4} parent=1 // loop_body
      %s16 = ssub.s32 %s11, 1
      %s17 = ssub.s32 %s11, 2
      %s24 = sadd.s32 1, %s19
      %p25 = scmp.ge.s32.totalorder %s24, 1
      %s26 = scalar_select %p25, 0, %s24
      %s27 = sadd.s32 1, %s18
      %s28 = scalar_select %p25, %s27, %s18
      %p29 = scmp.ge.s32.totalorder %s28, 2
      %s30 = scalar_select %p29, 0, %s28
      %s31 = ssub.s32 %s19, %s26
      %p32 = scmp.eq.s32.totalorder %s31, 0
      %s34 = sadd.s32 %s33, 1
      %s35 = scalar_select %p32, %s33, %s34
      %p38 = pneg %p32
      %p39 = scmp.eq.s32.totalorder %s11, 1
      %p40 = por %p38, %p39
      %p41 = scmp.ne.s32.totalorder %s33, %s36
      %p42 = scmp.eq.s32.totalorder %s11, 0
      %p43 = por %p41, %p42
      %p44 = scmp.ne.s32.totalorder %s33, %s36
      %p45 = scmp.eq.s32.totalorder %s16, 1
      %p46 = por %p44, %p45
      %p47 = scmp.ne.s32.totalorder %s36, %s37
      %p48 = scmp.eq.s32.totalorder %s16, 0
      %p49 = por %p47, %p48
      %p50 = scmp.ne.s32.totalorder %s36, %s37
      %p51 = scmp.eq.s32.totalorder %s17, 1
      %p52 = por %p50, %p51
      %p54 = scmp.ne.s32.totalorder %s37, %s53
      %p55 = scmp.eq.s32.totalorder %s17, 0
      %p56 = por %p54, %p55
      %s58 = sadd.s32 %s57, 1
      %p61 = scmp.eq.s32.totalorder %s11, 1
      %p62 = scmp.ne.s32.totalorder %s57, %s59
      %p63 = scmp.eq.s32.totalorder %s11, 0
      %p64 = por %p62, %p63
      %p65 = scmp.ne.s32.totalorder %s57, %s59
      %p66 = scmp.eq.s32.totalorder %s16, 1
      %p67 = por %p65, %p66
      %p68 = scmp.ne.s32.totalorder %s59, %s60
      %p69 = scmp.eq.s32.totalorder %s16, 0
      %p70 = por %p68, %p69
      %p71 = scmp.ne.s32.totalorder %s59, %s60
      %p72 = scmp.eq.s32.totalorder %s17, 1
      %p73 = por %p71, %p72
      %p75 = scmp.ne.s32.totalorder %s60, %s74
      %p76 = scmp.eq.s32.totalorder %s17, 0
      %p77 = por %p75, %p76
      %s78 = ssub.s32 %s19, %s26
      %p79 = scmp.eq.s32.totalorder %s78, 0
      %s81 = sadd.s32 %s80, 1
      %s82 = scalar_select %p79, %s80, %s81
      %p85 = pneg %p79
      %p86 = scmp.eq.s32.totalorder %s11, 1
      %p87 = por %p85, %p86
      %p88 = scmp.ne.s32.totalorder %s80, %s83
      %p89 = scmp.eq.s32.totalorder %s11, 0
      %p90 = por %p88, %p89
      %p91 = scmp.ne.s32.totalorder %s80, %s83
      %p92 = scmp.eq.s32.totalorder %s16, 1
      %p93 = por %p91, %p92
      %p94 = scmp.ne.s32.totalorder %s83, %s84
      %p95 = scmp.eq.s32.totalorder %s16, 0
      %p96 = por %p94, %p95
      %p97 = scmp.ne.s32.totalorder %s83, %s84
      %p98 = scmp.eq.s32.totalorder %s17, 1
      %p99 = por %p97, %p98
      %p101 = scmp.ne.s32.totalorder %s84, %s100
      %p102 = scmp.eq.s32.totalorder %s17, 0
      %p103 = por %p101, %p102
      %p104 = scmp.le.s32.totalorder 1, %s11
      %p105 = scmp.lt.s32.totalorder %s11, 3
      %p106 = pnand %p104, %p105
      %p107 = pneg %p106
      // Predicated region
      $region9: #{discriminator_forward.4} parent=5 // pred_check
        _
      $region10: #{discriminator_forward.4} parent=5 // pred_check_branch
        %109 = sbr.rel (%p106) target = $region12
      $region11: #{discriminator_forward.4} parent=5 // pred_region
        %s110 = ssub.s32 %s11, 1
        // Predicated region
        $region13: #{discriminator_forward.4} parent=11 // pred_check
          %p111 = pneg %p49
        $region14: #{discriminator_forward.4} parent=11 // pred_check_branch
          %113 = sbr.rel (%p111) target = $region16
        $region15: #{discriminator_forward.4} parent=11 // pred_region
          %s114 = smul.u32 16, %s21
          %s116 = ssub.s32 1024, 1024
          %117 = vsyncadd [#allocation5], %s116
          %s118 = smul.addr %s114, 64
          %s119 = scalar_lea.hbm %s0, %s118
          %s120 = sshll.u32 [#allocation4], 4
          %s121 = int_to_ptr.vmem [resolvable:$true] %s120
          %126 = dma.hbm_to_vmem [thread:$0]  %s119, 1024, %s121, [#allocation5], 64, 64, 4
        $region16: #{discriminator_forward.4} parent=11 // pred_fallthru
          _
        // Predicated region
        $region17: #{discriminator_forward.4} parent=11 // pred_check
          %p127 = pneg %p70
        $region18: #{discriminator_forward.4} parent=11 // pred_check_branch
          %129 = sbr.rel (%p127) target = $region20
        $region19: #{discriminator_forward.4} parent=11 // pred_region
          %s131 = ssub.s32 320, 320
          %132 = vsyncadd [#allocation8], %s131
          %s133 = sshll.u32 [#allocation7], 4
          %s134 = int_to_ptr.vmem [resolvable:$true] %s133
          %139 = dma.hbm_to_vmem [thread:$0]  %s1, 320, %s134, [#allocation8], 64, 64, 4
        $region20: #{discriminator_forward.4} parent=11 // pred_fallthru
          _
      $region12: #{discriminator_forward.4} parent=5 // pred_fallthru
        _
      %p140 = scmp.lt.s32.totalorder %s11, 2
      // Predicated region
      $region21: #{discriminator_forward.4} parent=5 // pred_check
        %p141 = pneg %p140
      $region22: #{discriminator_forward.4} parent=5 // pred_check_branch
        %143 = sbr.rel (%p141) target = $region24
      $region23: #{discriminator_forward.4} parent=5 // pred_region
        _
      $region24: #{discriminator_forward.4} parent=5 // pred_fallthru
        _
      %p144 = scmp.le.s32.totalorder 1, %s11
      %p145 = scmp.lt.s32.totalorder %s11, 3
      %p146 = pnand %p144, %p145
      %p147 = pneg %p146
      // Predicated region
      $region25: #{discriminator_forward.4} parent=5 // pred_check
        _
      $region26: #{discriminator_forward.4} parent=5 // pred_check_branch
        %149 = sbr.rel (%p146) target = $region28
      $region27: #{discriminator_forward.4} parent=5 // pred_region
        %s150 = ssub.s32 %s11, 1
        // Predicated region
        $region29: #{discriminator_forward.4} parent=27 // pred_check
          %p151 = pneg %p49
        $region30: #{discriminator_forward.4} parent=27 // pred_check_branch
          %153 = sbr.rel (%p151) target = $region32
        $region31: #{discriminator_forward.4} parent=27 // pred_region
          %154 = dma.done [#allocation5], 1024
        $region32: #{discriminator_forward.4} parent=27 // pred_fallthru
          _
        // Predicated region
        $region33: #{discriminator_forward.4} parent=27 // pred_check
          %p155 = pneg %p70
        $region34: #{discriminator_forward.4} parent=27 // pred_check_branch
          %157 = sbr.rel (%p155) target = $region36
        $region35: #{discriminator_forward.4} parent=27 // pred_region
          %158 = dma.done [#allocation8], 320
        $region36: #{discriminator_forward.4} parent=27 // pred_fallthru
          _
        %p159 = pneg %p49
        %p160 = pneg %p46
        %p161 = pneg %p70
        %p162 = pneg %p67
        %p163 = pneg %p96
        %p164 = pneg %p93
        %s165 = smul.u32 16, %s21
        %s166 = smul.u32 16, %s21
        %p168 = scmp.eq.s32.totalorder %s20, 0
        %p169 = scmp.eq.s32.totalorder %s21, 0
        %p170 = pnand %p168, %p169
        %p171 = pneg %p170
        // Predicated region
        $region37: #{discriminator_forward.4} parent=27 // pred_check
          _
        $region38: #{discriminator_forward.4} parent=27 // pred_check_branch
          %173 = sbr.rel (%p170) target = $region40
        $region39: #{discriminator_forward.4} parent=27 // pred_region
          %174 = vst [vmem:[#allocation2] sm:$0x1] 0.0
          %175 = vst [vmem:[#allocation3] sm:$0x1] 0.0
        $region40: #{discriminator_forward.4} parent=27 // pred_fallthru
          _
        %v176 = vld [vmem:[#allocation4] sm:$0xf]
        %v177 = vld [vmem:[#allocation4 + $0x4] sm:$0xf]
        %v178 = vld [vmem:[#allocation4 + $0x8] sm:$0xf]
        %v179 = vld [vmem:[#allocation4 + $0xc] sm:$0xf]
        %v180 = vld [vmem:[#allocation4 + $0x10] sm:$0xf]
        %v181 = vld [vmem:[#allocation4 + $0x14] sm:$0xf]
        %v182 = vld [vmem:[#allocation4 + $0x18] sm:$0xf]
        %v183 = vld [vmem:[#allocation4 + $0x1c] sm:$0xf]
        %v184 = vld [vmem:[#allocation4 + $0x20] sm:$0xf]
        %v185 = vld [vmem:[#allocation4 + $0x24] sm:$0xf]
        %v186 = vld [vmem:[#allocation4 + $0x28] sm:$0xf]
        %v187 = vld [vmem:[#allocation4 + $0x2c] sm:$0xf]
        %v188 = vld [vmem:[#allocation4 + $0x30] sm:$0xf]
        %v189 = vld [vmem:[#allocation4 + $0x34] sm:$0xf]
        %v190 = vld [vmem:[#allocation4 + $0x38] sm:$0xf]
        %v191 = vld [vmem:[#allocation4 + $0x3c] sm:$0xf]
        %v192 = vld [vmem:[#allocation7] sm:$0xf]
        %v193 = vld [vmem:[#allocation7 + $0x4] sm:$0xf]
        %v194 = vld [vmem:[#allocation7 + $0x8] sm:$0xf]
        %v195 = vld [vmem:[#allocation7 + $0xc] sm:$0xf]
        %v196 = vld [vmem:[#allocation7 + $0x10] sm:$0x3]
        %v213 = vunpack.c.l.b16 %v176
        %v214 = vunpack.c.l.b16 %v177
        %v215 = vunpack.c.l.b16 %v178
        %v216 = vunpack.c.l.b16 %v179
        %v217 = vunpack.c.l.b16 %v180
        %v218 = vunpack.c.l.b16 %v181
        %v219 = vunpack.c.l.b16 %v182
        %v220 = vunpack.c.l.b16 %v183
        %v221 = vunpack.c.l.b16 %v184
        %v222 = vunpack.c.l.b16 %v185
        %v223 = vunpack.c.l.b16 %v186
        %v224 = vunpack.c.l.b16 %v187
        %v225 = vunpack.c.l.b16 %v188
        %v226 = vunpack.c.l.b16 %v189
        %v227 = vunpack.c.l.b16 %v190
        %v228 = vunpack.c.l.b16 %v191
        %v229 = vpack.c.b16 %v214, %v213
        %v230 = vpack.c.b16 %v216, %v215
        %v231 = vpack.c.b16 %v218, %v217
        %v232 = vpack.c.b16 %v220, %v219
        %v233 = vpack.c.b16 %v222, %v221
        %v234 = vpack.c.b16 %v224, %v223
        %v235 = vpack.c.b16 %v226, %v225
        %v236 = vpack.c.b16 %v228, %v227
        %v242 = vunpack.c.l.b16 %v192
        %v243 = vunpack.c.l.b16 %v193
        %v244 = vunpack.c.l.b16 %v194
        %v245 = vunpack.c.l.b16 %v195
        %v246 = vunpack.c.l.b16 %v196
        %v247 = vpack.c.b16 %v243, %v242
        %v248 = vpack.c.b16 %v245, %v244
        %v249 = vpack.c.b16 %v246, %v246
        %vm252 = vcmask 293888
        %v254 = vsel %vm252, %v229, 0
        %v257 = vsel %vm252, %v230, 0
        %v260 = vsel %vm252, %v231, 0
        %v263 = vsel %vm252, %v232, 0
        %v266 = vsel %vm252, %v233, 0
        %v269 = vsel %vm252, %v234, 0
        %v272 = vsel %vm252, %v235, 0
        %v275 = vsel %vm252, %v236, 0
        %vm277 = vcmask 1041408
        %v279 = vsel %vm277, %v249, 0
        %281 = vmatprep.subr.bf16.mxu0 0
        %282 = vmatpush1.bf16.msra.mxu0 %v247
        %283 = vmatprep.subr.bf16.mxu0 0
        %284 = vmatpush1.bf16.msra.mxu0 %v248
        %285 = vmatprep.subr.bf16.mxu0 0
        %286 = vmatpush1.bf16.msra.mxu0 %v279
        %287 = vmatprep.subr.bf16.mxu0 0
        %288 = vmatpush1.bf16.msra.mxu0 0
        %289 = vmatprep.subr.bf16.mxu0 0
        %290 = vmatpush1.bf16.msra.mxu0 0
        %291 = vmatprep.subr.bf16.mxu0 0
        %292 = vmatpush1.bf16.msra.mxu0 0
        %293 = vmatprep.subr.bf16.mxu0 0
        %294 = vmatpush1.bf16.msra.mxu0 0
        %295 = vmatprep.subr.bf16.mxu0 0
        %296 = vmatpush1.bf16.msra.mxu0 0
        %297 = vmatprep.subr.bf16.mxu0 0
        %298 = vmatpush1.bf16.msra.mxu0 0
        %299 = vmatprep.subr.bf16.mxu0 0
        %300 = vmatpush1.bf16.msra.mxu0 0
        %301 = vmatprep.subr.bf16.mxu0 0
        %302 = vmatpush1.bf16.msra.mxu0 0
        %303 = vmatprep.subr.bf16.mxu0 0
        %304 = vmatpush1.bf16.msra.mxu0 0
        %305 = vmatprep.subr.bf16.mxu0 0
        %306 = vmatpush1.bf16.msra.mxu0 0
        %307 = vmatprep.subr.bf16.mxu0 0
        %308 = vmatpush1.bf16.msra.mxu0 0
        %309 = vmatprep.subr.bf16.mxu0 0
        %310 = vmatpush1.bf16.msra.mxu0 0
        %311 = vmatprep.subr.bf16.mxu0 0
        %312 = vmatpush1.bf16.msra.mxu0 0
        %313 = vmatprep.mubr.bf16.mxu0 0
        %314 = vmatmul.mubr.bf16.gmra.mrb[0].mxu0 %v254
        %v315 = vpop.f32.mrb[0].mxu0
        %v316 = vadd.f32 0.0, %v315
        %v317 = vpop.f32.mrb[0].mxu0
        %v318 = vpop.f32.mrb[0].mxu0
        %v319 = vadd.f32 0.0, %v318
        %v320 = vpop.f32.mrb[0].mxu0
        %321 = vmatprep.mubr.bf16.mxu0 0
        %322 = vmatmul.mubr.bf16.gmra.mrb[0].mxu0 %v257
        %v323 = vpop.f32.mrb[0].mxu0
        %v324 = vadd.f32 0.0, %v323
        %v325 = vpop.f32.mrb[0].mxu0
        %v326 = vpop.f32.mrb[0].mxu0
        %v327 = vadd.f32 0.0, %v326
        %v328 = vpop.f32.mrb[0].mxu0
        %329 = vmatprep.mubr.bf16.mxu0 0
        %330 = vmatmul.mubr.bf16.gmra.mrb[0].mxu0 %v260
        %v331 = vpop.f32.mrb[0].mxu0
        %v332 = vadd.f32 0.0, %v331
        %v333 = vpop.f32.mrb[0].mxu0
        %v334 = vpop.f32.mrb[0].mxu0
        %v335 = vadd.f32 0.0, %v334
        %v336 = vpop.f32.mrb[0].mxu0
        %337 = vmatprep.mubr.bf16.mxu0 0
        %338 = vmatmul.mubr.bf16.gmra.mrb[0].mxu0 %v263
        %v339 = vpop.f32.mrb[0].mxu0
        %v340 = vadd.f32 0.0, %v339
        %v341 = vpop.f32.mrb[0].mxu0
        %v342 = vpop.f32.mrb[0].mxu0
        %v343 = vadd.f32 0.0, %v342
        %v344 = vpop.f32.mrb[0].mxu0
        %345 = vmatprep.mubr.bf16.mxu0 0
        %346 = vmatmul.mubr.bf16.gmra.mrb[0].mxu0 %v266
        %v347 = vpop.f32.mrb[0].mxu0
        %v348 = vadd.f32 0.0, %v347
        %v349 = vpop.f32.mrb[0].mxu0
        %v350 = vpop.f32.mrb[0].mxu0
        %v351 = vadd.f32 0.0, %v350
        %v352 = vpop.f32.mrb[0].mxu0
        %353 = vmatprep.mubr.bf16.mxu0 0
        %354 = vmatmul.mubr.bf16.gmra.mrb[0].mxu0 %v269
        %v355 = vpop.f32.mrb[0].mxu0
        %v356 = vadd.f32 0.0, %v355
        %v357 = vpop.f32.mrb[0].mxu0
        %v358 = vpop.f32.mrb[0].mxu0
        %v359 = vadd.f32 0.0, %v358
        %v360 = vpop.f32.mrb[0].mxu0
        %361 = vmatprep.mubr.bf16.mxu0 0
        %362 = vmatmul.mubr.bf16.gmra.mrb[0].mxu0 %v272
        %v363 = vpop.f32.mrb[0].mxu0
        %v364 = vadd.f32 0.0, %v363
        %v365 = vpop.f32.mrb[0].mxu0
        %v366 = vpop.f32.mrb[0].mxu0
        %v367 = vadd.f32 0.0, %v366
        %v368 = vpop.f32.mrb[0].mxu0
        %369 = vmatprep.mubr.bf16.mxu0 0
        %370 = vmatmul.mubr.bf16.gmra.mrb[0].mxu0 %v275
        %v371 = vpop.f32.mrb[0].mxu0
        %v372 = vadd.f32 0.0, %v371
        %v373 = vpop.f32.mrb[0].mxu0
        %v374 = vpop.f32.mrb[0].mxu0
        %v375 = vadd.f32 0.0, %v374
        %v376 = vpop.f32.mrb[0].mxu0
        %377 = vdwg.mxu0
        %s378 = smul.u32 %s21, 128
        %v379 = vlaneseq
        %v380 = vshrl.u32 %v379, 7
        %v381 = vadd.s32 %v380, 8
        %v382 = vadd.s32 %v380, 16
        %v383 = vadd.s32 %v380, 24
        %v384 = vadd.s32 %v380, 32
        %v385 = vadd.s32 %v380, 40
        %v386 = vadd.s32 %v380, 48
        %v387 = vadd.s32 %v380, 56
        %v388 = vadd.s32 %v380, 64
        %v389 = vadd.s32 %v380, 72
        %v390 = vadd.s32 %v380, 80
        %v391 = vadd.s32 %v380, 88
        %v392 = vadd.s32 %v380, 96
        %v393 = vadd.s32 %v380, 104
        %v394 = vadd.s32 %v380, 112
        %v395 = vadd.s32 %v380, 120
        %v396 = vstv %s378
        %v397 = vadd.s32 %v396, %v380
        %v398 = vadd.s32 %v396, %v381
        %v399 = vadd.s32 %v396, %v382
        %v400 = vadd.s32 %v396, %v383
        %v401 = vadd.s32 %v396, %v384
        %v402 = vadd.s32 %v396, %v385
        %v403 = vadd.s32 %v396, %v386
        %v404 = vadd.s32 %v396, %v387
        %v405 = vadd.s32 %v396, %v388
        %v406 = vadd.s32 %v396, %v389
        %v407 = vadd.s32 %v396, %v390
        %v408 = vadd.s32 %v396, %v391
        %v409 = vadd.s32 %v396, %v392
        %v410 = vadd.s32 %v396, %v393
        %v411 = vadd.s32 %v396, %v394
        %v412 = vadd.s32 %v396, %v395
        %vm413 = vcmp.lt.s32.totalorder %v397, 128
        %vm414 = vcmp.lt.s32.totalorder %v398, 128
        %vm415 = vcmp.lt.s32.totalorder %v399, 128
        %vm416 = vcmp.lt.s32.totalorder %v400, 128
        %vm417 = vcmp.lt.s32.totalorder %v401, 128
        %vm418 = vcmp.lt.s32.totalorder %v402, 128
        %vm419 = vcmp.lt.s32.totalorder %v403, 128
        %vm420 = vcmp.lt.s32.totalorder %v404, 128
        %vm421 = vcmp.lt.s32.totalorder %v405, 128
        %vm422 = vcmp.lt.s32.totalorder %v406, 128
        %vm423 = vcmp.lt.s32.totalorder %v407, 128
        %vm424 = vcmp.lt.s32.totalorder %v408, 128
        %vm425 = vcmp.lt.s32.totalorder %v409, 128
        %vm426 = vcmp.lt.s32.totalorder %v410, 128
        %vm427 = vcmp.lt.s32.totalorder %v411, 128
        %vm428 = vcmp.lt.s32.totalorder %v412, 128
        // Predicated region
        $region41: #{discriminator_forward.4} parent=27 // pred_check
          %p429 = pneg %p168
        $region42: #{discriminator_forward.4} parent=27 // pred_check_branch
          %431 = sbr.rel (%p429) target = $region44
        $region43: #{discriminator_forward.4} parent=27 // pred_region
          %v432 = vsel %vm413, %v316, 0.0
          %v433 = vsel %vm414, %v319, 0.0
          %v434 = vsel %vm415, %v324, 0.0
          %v435 = vsel %vm416, %v327, 0.0
          %v436 = vsel %vm417, %v332, 0.0
          %v437 = vsel %vm418, %v335, 0.0
          %v438 = vsel %vm419, %v340, 0.0
          %v439 = vsel %vm420, %v343, 0.0
          %v440 = vsel %vm421, %v348, 0.0
          %v441 = vsel %vm422, %v351, 0.0
          %v442 = vsel %vm423, %v356, 0.0
          %v443 = vsel %vm424, %v359, 0.0
          %v444 = vsel %vm425, %v364, 0.0
          %v445 = vsel %vm426, %v367, 0.0
          %v446 = vsel %vm427, %v372, 0.0
          %v447 = vsel %vm428, %v375, 0.0
          %v448 = vld [vmem:[#allocation2] sm:$0x1]
          %v449 = vadd.f32 %v432, %v433
          %v450 = vadd.f32 %v449, %v434
          %v451 = vadd.f32 %v450, %v435
          %v452 = vadd.f32 %v451, %v436
          %v453 = vadd.f32 %v452, %v437
          %v454 = vadd.f32 %v453, %v438
          %v455 = vadd.f32 %v454, %v439
          %v456 = vadd.f32 %v455, %v440
          %v457 = vadd.f32 %v456, %v441
          %v458 = vadd.f32 %v457, %v442
          %v459 = vadd.f32 %v458, %v443
          %v460 = vadd.f32 %v459, %v444
          %v461 = vadd.f32 %v460, %v445
          %v462 = vadd.f32 %v461, %v446
          %v463 = vadd.f32 %v462, %v447
          %v464 = vrot.slane %v463, 4
          %v465 = vadd.f32 %v463, %v464
          %v466 = vrot.slane %v465, 2
          %v467 = vadd.f32 %v465, %v466
          %v468 = vrot.slane %v467, 1
          %v469 = vadd.f32 %v467, %v468
          %v470 = vadd.f32 %v448, %v469
          %471 = vst [vmem:[#allocation2] sm:$0x1] %v470
          %v472 = vld [vmem:[#allocation3] sm:$0x1]
          %v473 = vmul.f32 %v432, %v432
          %v474 = vmul.f32 %v433, %v433
          %v475 = vmul.f32 %v434, %v434
          %v476 = vmul.f32 %v435, %v435
          %v477 = vmul.f32 %v436, %v436
          %v478 = vmul.f32 %v437, %v437
          %v479 = vmul.f32 %v438, %v438
          %v480 = vmul.f32 %v439, %v439
          %v481 = vmul.f32 %v440, %v440
          %v482 = vmul.f32 %v441, %v441
          %v483 = vmul.f32 %v442, %v442
          %v484 = vmul.f32 %v443, %v443
          %v485 = vmul.f32 %v444, %v444
          %v486 = vmul.f32 %v445, %v445
          %v487 = vmul.f32 %v446, %v446
          %v488 = vmul.f32 %v447, %v447
          %v489 = vadd.f32 %v473, %v474
          %v490 = vadd.f32 %v489, %v475
          %v491 = vadd.f32 %v490, %v476
          %v492 = vadd.f32 %v491, %v477
          %v493 = vadd.f32 %v492, %v478
          %v494 = vadd.f32 %v493, %v479
          %v495 = vadd.f32 %v494, %v480
          %v496 = vadd.f32 %v495, %v481
          %v497 = vadd.f32 %v496, %v482
          %v498 = vadd.f32 %v497, %v483
          %v499 = vadd.f32 %v498, %v484
          %v500 = vadd.f32 %v499, %v485
          %v501 = vadd.f32 %v500, %v486
          %v502 = vadd.f32 %v501, %v487
          %v503 = vadd.f32 %v502, %v488
          %v504 = vrot.slane %v503, 4
          %v505 = vadd.f32 %v503, %v504
          %v506 = vrot.slane %v505, 2
          %v507 = vadd.f32 %v505, %v506
          %v508 = vrot.slane %v507, 1
          %v509 = vadd.f32 %v507, %v508
          %v510 = vadd.f32 %v472, %v509
          %511 = vst [vmem:[#allocation3] sm:$0x1] %v510
        $region44: #{discriminator_forward.4} parent=27 // pred_fallthru
          _
        %p512 = scmp.eq.s32.totalorder %s20, 1
        // Predicated region
        $region45: #{discriminator_forward.4} parent=27 // pred_check
          %p513 = pneg %p512
        $region46: #{discriminator_forward.4} parent=27 // pred_check_branch
          %515 = sbr.rel (%p513) target = $region48
        $region47: #{discriminator_forward.4} parent=27 // pred_region
          %v516 = vld [vmem:[#allocation2] sm:$0x1]
          %v517 = vmul.f32 %v516, 0.0078125
          %v518 = vld [vmem:[#allocation3] sm:$0x1]
          %v519 = vmul.f32 %v518, 0.0078125
          %v520 = vmul.f32 %v517, %v517
          %v521 = vsub.f32 %v519, %v520
          %v522 = vmax.f32 %v521, 0.0
          %v524 = vlaneseq
          %v525 = vshrl.u32 %v524, 7
          %v526 = vsub.s32 0, %v525
          %v527 = vrot.slane %v517, %v526
          %v529 = vsub.f32 %v316, %v527
          %v530 = vsub.f32 %v319, %v527
          %v531 = vsub.f32 %v324, %v527
          %v532 = vsub.f32 %v327, %v527
          %v533 = vsub.f32 %v332, %v527
          %v534 = vsub.f32 %v335, %v527
          %v535 = vsub.f32 %v340, %v527
          %v536 = vsub.f32 %v343, %v527
          %v537 = vsub.f32 %v348, %v527
          %v538 = vsub.f32 %v351, %v527
          %v539 = vsub.f32 %v356, %v527
          %v540 = vsub.f32 %v359, %v527
          %v541 = vsub.f32 %v364, %v527
          %v542 = vsub.f32 %v367, %v527
          %v543 = vsub.f32 %v372, %v527
          %v544 = vsub.f32 %v375, %v527
          %v545 = vadd.f32 %v522, 1e-05
          %v546 = vrsqrt.pop %v545
          %v548 = vlaneseq
          %v549 = vshrl.u32 %v548, 7
          %v550 = vsub.s32 0, %v549
          %v551 = vrot.slane %v546, %v550
          %v553 = vmul.f32 %v529, %v551
          %v554 = vmul.f32 %v530, %v551
          %v555 = vmul.f32 %v531, %v551
          %v556 = vmul.f32 %v532, %v551
          %v557 = vmul.f32 %v533, %v551
          %v558 = vmul.f32 %v534, %v551
          %v559 = vmul.f32 %v535, %v551
          %v560 = vmul.f32 %v536, %v551
          %v561 = vmul.f32 %v537, %v551
          %v562 = vmul.f32 %v538, %v551
          %v563 = vmul.f32 %v539, %v551
          %v564 = vmul.f32 %v540, %v551
          %v565 = vmul.f32 %v541, %v551
          %v566 = vmul.f32 %v542, %v551
          %v567 = vmul.f32 %v543, %v551
          %v568 = vmul.f32 %v544, %v551
          %v569 = vmul.f32 %v553, 0.2
          %v570 = vmul.f32 %v554, 0.2
          %v571 = vmul.f32 %v555, 0.2
          %v572 = vmul.f32 %v556, 0.2
          %v573 = vmul.f32 %v557, 0.2
          %v574 = vmul.f32 %v558, 0.2
          %v575 = vmul.f32 %v559, 0.2
          %v576 = vmul.f32 %v560, 0.2
          %v577 = vmul.f32 %v561, 0.2
          %v578 = vmul.f32 %v562, 0.2
          %v579 = vmul.f32 %v563, 0.2
          %v580 = vmul.f32 %v564, 0.2
          %v581 = vmul.f32 %v565, 0.2
          %v582 = vmul.f32 %v566, 0.2
          %v583 = vmul.f32 %v567, 0.2
          %v584 = vmul.f32 %v568, 0.2
          %v585 = vmax.f32 %v553, %v569
          %v586 = vmax.f32 %v554, %v570
          %v587 = vmax.f32 %v555, %v571
          %v588 = vmax.f32 %v556, %v572
          %v589 = vmax.f32 %v557, %v573
          %v590 = vmax.f32 %v558, %v574
          %v591 = vmax.f32 %v559, %v575
          %v592 = vmax.f32 %v560, %v576
          %v593 = vmax.f32 %v561, %v577
          %v594 = vmax.f32 %v562, %v578
          %v595 = vmax.f32 %v563, %v579
          %v596 = vmax.f32 %v564, %v580
          %v597 = vmax.f32 %v565, %v581
          %v598 = vmax.f32 %v566, %v582
          %v599 = vmax.f32 %v567, %v583
          %v600 = vmax.f32 %v568, %v584
          %v601 = vpack.c.bf16 %v586, %v585
          %v602 = vpack.c.bf16 %v588, %v587
          %v603 = vpack.c.bf16 %v590, %v589
          %v604 = vpack.c.bf16 %v592, %v591
          %v605 = vpack.c.bf16 %v594, %v593
          %v606 = vpack.c.bf16 %v596, %v595
          %v607 = vpack.c.bf16 %v598, %v597
          %v608 = vpack.c.bf16 %v600, %v599
          %v617 = vunpack.c.l.b16 %v601
          %v618 = vunpack.c.h.b16 %v601
          %v619 = vunpack.c.l.b16 %v602
          %v620 = vunpack.c.h.b16 %v602
          %v621 = vunpack.c.l.b16 %v603
          %v622 = vunpack.c.h.b16 %v603
          %v623 = vunpack.c.l.b16 %v604
          %v624 = vunpack.c.h.b16 %v604
          %v625 = vunpack.c.l.b16 %v605
          %v626 = vunpack.c.h.b16 %v605
          %v627 = vunpack.c.l.b16 %v606
          %v628 = vunpack.c.h.b16 %v606
          %v629 = vunpack.c.l.b16 %v607
          %v630 = vunpack.c.h.b16 %v607
          %v631 = vunpack.c.l.b16 %v608
          %v632 = vunpack.c.h.b16 %v608
          %v633 = vpack.c.b16 %v617, %v617
          %v634 = vpack.c.b16 %v618, %v618
          %v635 = vpack.c.b16 %v619, %v619
          %v636 = vpack.c.b16 %v620, %v620
          %v637 = vpack.c.b16 %v621, %v621
          %v638 = vpack.c.b16 %v622, %v622
          %v639 = vpack.c.b16 %v623, %v623
          %v640 = vpack.c.b16 %v624, %v624
          %v641 = vpack.c.b16 %v625, %v625
          %v642 = vpack.c.b16 %v626, %v626
          %v643 = vpack.c.b16 %v627, %v627
          %v644 = vpack.c.b16 %v628, %v628
          %v645 = vpack.c.b16 %v629, %v629
          %v646 = vpack.c.b16 %v630, %v630
          %v647 = vpack.c.b16 %v631, %v631
          %v648 = vpack.c.b16 %v632, %v632
          %665 = vst [vmem:[#allocation9] sm:$0xf] %v633
          %666 = vst [vmem:[#allocation9 + $0x4] sm:$0xf] %v634
          %667 = vst [vmem:[#allocation9 + $0x8] sm:$0xf] %v635
          %668 = vst [vmem:[#allocation9 + $0xc] sm:$0xf] %v636
          %669 = vst [vmem:[#allocation9 + $0x10] sm:$0xf] %v637
          %670 = vst [vmem:[#allocation9 + $0x14] sm:$0xf] %v638
          %671 = vst [vmem:[#allocation9 + $0x18] sm:$0xf] %v639
          %672 = vst [vmem:[#allocation9 + $0x1c] sm:$0xf] %v640
          %673 = vst [vmem:[#allocation9 + $0x20] sm:$0xf] %v641
          %674 = vst [vmem:[#allocation9 + $0x24] sm:$0xf] %v642
          %675 = vst [vmem:[#allocation9 + $0x28] sm:$0xf] %v643
          %676 = vst [vmem:[#allocation9 + $0x2c] sm:$0xf] %v644
          %677 = vst [vmem:[#allocation9 + $0x30] sm:$0xf] %v645
          %678 = vst [vmem:[#allocation9 + $0x34] sm:$0xf] %v646
          %679 = vst [vmem:[#allocation9 + $0x38] sm:$0xf] %v647
          %680 = vst [vmem:[#allocation9 + $0x3c] sm:$0xf] %v648
        $region48: #{discriminator_forward.4} parent=27 // pred_fallthru
          _
        // Predicated region
        $region49: #{discriminator_forward.4} parent=27 // pred_check
          %p681 = pneg %p93
        $region50: #{discriminator_forward.4} parent=27 // pred_check_branch
          %683 = sbr.rel (%p681) target = $region52
        $region51: #{discriminator_forward.4} parent=27 // pred_region
          %s684 = smul.u32 16, %s21
          %s686 = ssub.s32 1024, 1024
          %687 = vsyncadd [#allocation6], %s686
          %s688 = smul.addr %s684, 64
          %s689 = scalar_lea.hbm %s2, %s688
          %s690 = sshll.u32 [#allocation9], 4
          %s691 = int_to_ptr.vmem [resolvable:$true] %s690
          %696 = dma.vmem_to_hbm [thread:$0]  %s691, 1024, %s689, [#allocation6], 64, 64, 4
        $region52: #{discriminator_forward.4} parent=27 // pred_fallthru
          _
        // Predicated region
        $region53: #{discriminator_forward.4} parent=27 // pred_check
          %p697 = pneg %p93
        $region54: #{discriminator_forward.4} parent=27 // pred_check_branch
          %699 = sbr.rel (%p697) target = $region56
        $region55: #{discriminator_forward.4} parent=27 // pred_region
          %700 = dma.done [#allocation6], 1024
        $region56: #{discriminator_forward.4} parent=27 // pred_fallthru
          _
      $region28: #{discriminator_forward.4} parent=5 // pred_fallthru
        _
      %p701 = scmp.le.s32.totalorder 2, %s11
      // Predicated region
      $region57: #{discriminator_forward.4} parent=5 // pred_check
        %p702 = pneg %p701
      $region58: #{discriminator_forward.4} parent=5 // pred_check_branch
        %704 = sbr.rel (%p702) target = $region60
      $region59: #{discriminator_forward.4} parent=5 // pred_region
        %s705 = ssub.s32 %s11, 2
      $region60: #{discriminator_forward.4} parent=5 // pred_fallthru
        _
    $region6: #{discriminator_forward.4} parent=1 // loop_footer
      %s15 = sadd.s32 1, %s11
    $region7: #{discriminator_forward.4} parent=1 // loop_footer_branch
      %10 = sbr.rel target = $region3
    $region8: #{discriminator_forward.4} parent=1 // loop_exit
      _
    %706 = vsyncpa [#allocation5], 1
    %s707 = scalar_lea.sflag [#allocation5], 1
    %708 = vsyncpa %s707, 1
    %709 = vsyncpa [#allocation8], 1
    %710 = vsyncpa [#allocation6], 1
    %s711 = scalar_lea.sflag [#allocation6], 1
    %712 = vsyncpa %s711, 1

// kernel: discriminator_forward.5
$region0: #{discriminator_forward.5}
  #allocation0 [shape = 'u32[]', space=smem, size = 0x4, offset = 0x4, fixed_abs, tag = 'smem constant byte address 0x4 - core index']
  #allocation1 [shape = 'u32[144,128]{1,0:T(1,128)}', space=vmem, size = 0x12000, scoped, tag = 'internal scratch']
  #allocation2 [shape = 'f32[1,128]{1,0:T(1,128)}', space=vmem, size = 0x200, scoped, tag = 'scratch operand']
  #allocation3 [shape = 'f32[1,128]{1,0:T(1,128)}', space=vmem, size = 0x200, scoped, tag = 'scratch operand']
  %s0 = inlined_call_operand.hbm [shape: bf16[32,144], index: 0, kind: input, shape index: {}]
  %s1 = inlined_call_operand.hbm [shape: bf16[144,128], index: 1, kind: input, shape index: {}]
  %s2 = inlined_call_operand.hbm [shape: bf16[32,128], index: 2, kind: output, shape index: {}]
  %s3 = sld [smem:[#allocation0]]
  $region61: #{discriminator_forward.5} parent=0
    _
  %s5 = ssub.s32 1, %s3
  %s6 = scalar_select 0, %s5, %s3
  $region1: #{discriminator_forward.5} parent=0
    #allocation4 [shape = 'u8[16384]{0}', space=vmem, size = 0x4000, scoped, tag = 'input window, operand 0, single buffered']
    #allocation5 [shape = 's32[2]{0}', space=sflag, size = 0x8, scoped, tag = 'scoped memory for discriminator_forward.5']
    #allocation6 [shape = 's32[2]{0}', space=sflag, size = 0x8, scoped, tag = 'scoped memory for discriminator_forward.5']
    #allocation7 [shape = 'u8[36864]{0}', space=vmem, size = 0x9000, scoped, tag = 'input window, operand 1, single buffered']
    #allocation8 [shape = 's32[1]{0}', space=sflag, size = 0x4, scoped, tag = 'scoped memory for discriminator_forward.5']
    #allocation9 [shape = 'u8[8192]{0}', space=vmem, size = 0x2000, scoped, tag = 'output window, operand 0, single buffered']
    %7 = vsyncpa [#allocation5], 0
    %8 = vsyncpa [#allocation8], 0
    %9 = vsyncpa [#allocation6], 0
    loop: start=0, step=1, limit=4
    $region2: #{discriminator_forward.5} parent=1 // loop_pre_header
      _
    $region3: #{discriminator_forward.5} parent=1 // loop_header
      %s11 = sphi 0, %s15
      %p12 = scmp.ge.s32.totalorder %s11, 4
      %s18 = sphi 0, %s30
      %s19 = sphi 0, %s26
      %s20 = sphi 0, %s18
      %s21 = sphi 0, %s19
      %s22 = sphi 0, %s20
      %s23 = sphi 0, %s21
      %s33 = sphi 0, %s35
      %s36 = sphi 0, %s33
      %s37 = sphi 0, %s36
      %s53 = sphi 0, %s37
      %s57 = sphi 0, %s57
      %s59 = sphi 0, %s57
      %s60 = sphi 0, %s59
      %s74 = sphi 0, %s60
      %s80 = sphi 0, %s82
      %s83 = sphi 0, %s80
      %s84 = sphi 0, %s83
      %s100 = sphi 0, %s84
    $region4: #{discriminator_forward.5} parent=1 // loop_header_branch
      %14 = sbr.rel (%p12) target = $region8
    $region5: #{discriminator_forward.5} parent=1 // loop_body
      %s16 = ssub.s32 %s11, 1
      %s17 = ssub.s32 %s11, 2
      %s24 = sadd.s32 1, %s19
      %p25 = scmp.ge.s32.totalorder %s24, 1
      %s26 = scalar_select %p25, 0, %s24
      %s27 = sadd.s32 1, %s18
      %s28 = scalar_select %p25, %s27, %s18
      %p29 = scmp.ge.s32.totalorder %s28, 2
      %s30 = scalar_select %p29, 0, %s28
      %s31 = ssub.s32 %s19, %s26
      %p32 = scmp.eq.s32.totalorder %s31, 0
      %s34 = sadd.s32 %s33, 1
      %s35 = scalar_select %p32, %s33, %s34
      %p38 = pneg %p32
      %p39 = scmp.eq.s32.totalorder %s11, 1
      %p40 = por %p38, %p39
      %p41 = scmp.ne.s32.totalorder %s33, %s36
      %p42 = scmp.eq.s32.totalorder %s11, 0
      %p43 = por %p41, %p42
      %p44 = scmp.ne.s32.totalorder %s33, %s36
      %p45 = scmp.eq.s32.totalorder %s16, 1
      %p46 = por %p44, %p45
      %p47 = scmp.ne.s32.totalorder %s36, %s37
      %p48 = scmp.eq.s32.totalorder %s16, 0
      %p49 = por %p47, %p48
      %p50 = scmp.ne.s32.totalorder %s36, %s37
      %p51 = scmp.eq.s32.totalorder %s17, 1
      %p52 = por %p50, %p51
      %p54 = scmp.ne.s32.totalorder %s37, %s53
      %p55 = scmp.eq.s32.totalorder %s17, 0
      %p56 = por %p54, %p55
      %s58 = sadd.s32 %s57, 1
      %p61 = scmp.eq.s32.totalorder %s11, 1
      %p62 = scmp.ne.s32.totalorder %s57, %s59
      %p63 = scmp.eq.s32.totalorder %s11, 0
      %p64 = por %p62, %p63
      %p65 = scmp.ne.s32.totalorder %s57, %s59
      %p66 = scmp.eq.s32.totalorder %s16, 1
      %p67 = por %p65, %p66
      %p68 = scmp.ne.s32.totalorder %s59, %s60
      %p69 = scmp.eq.s32.totalorder %s16, 0
      %p70 = por %p68, %p69
      %p71 = scmp.ne.s32.totalorder %s59, %s60
      %p72 = scmp.eq.s32.totalorder %s17, 1
      %p73 = por %p71, %p72
      %p75 = scmp.ne.s32.totalorder %s60, %s74
      %p76 = scmp.eq.s32.totalorder %s17, 0
      %p77 = por %p75, %p76
      %s78 = ssub.s32 %s19, %s26
      %p79 = scmp.eq.s32.totalorder %s78, 0
      %s81 = sadd.s32 %s80, 1
      %s82 = scalar_select %p79, %s80, %s81
      %p85 = pneg %p79
      %p86 = scmp.eq.s32.totalorder %s11, 1
      %p87 = por %p85, %p86
      %p88 = scmp.ne.s32.totalorder %s80, %s83
      %p89 = scmp.eq.s32.totalorder %s11, 0
      %p90 = por %p88, %p89
      %p91 = scmp.ne.s32.totalorder %s80, %s83
      %p92 = scmp.eq.s32.totalorder %s16, 1
      %p93 = por %p91, %p92
      %p94 = scmp.ne.s32.totalorder %s83, %s84
      %p95 = scmp.eq.s32.totalorder %s16, 0
      %p96 = por %p94, %p95
      %p97 = scmp.ne.s32.totalorder %s83, %s84
      %p98 = scmp.eq.s32.totalorder %s17, 1
      %p99 = por %p97, %p98
      %p101 = scmp.ne.s32.totalorder %s84, %s100
      %p102 = scmp.eq.s32.totalorder %s17, 0
      %p103 = por %p101, %p102
      %p104 = scmp.le.s32.totalorder 1, %s11
      %p105 = scmp.lt.s32.totalorder %s11, 3
      %p106 = pnand %p104, %p105
      %p107 = pneg %p106
      // Predicated region
      $region9: #{discriminator_forward.5} parent=5 // pred_check
        _
      $region10: #{discriminator_forward.5} parent=5 // pred_check_branch
        %109 = sbr.rel (%p106) target = $region12
      $region11: #{discriminator_forward.5} parent=5 // pred_region
        %s110 = ssub.s32 %s11, 1
        // Predicated region
        $region13: #{discriminator_forward.5} parent=11 // pred_check
          %p111 = pneg %p49
        $region14: #{discriminator_forward.5} parent=11 // pred_check_branch
          %113 = sbr.rel (%p111) target = $region16
        $region15: #{discriminator_forward.5} parent=11 // pred_region
          %s114 = smul.u32 4, %s21
          %s116 = ssub.s32 512, 512
          %117 = vsyncadd [#allocation5], %s116
          %s118 = smul.addr %s114, 2
          %s119 = smul.addr %s118, 64
          %s120 = scalar_lea.hbm %s0, %s119
          %s121 = sshll.u32 [#allocation4], 4
          %s122 = int_to_ptr.vmem [resolvable:$true] %s121
          %127 = dma.hbm_to_vmem [thread:$0]  %s120, 512, %s122, [#allocation5], 128, 128, 8
        $region16: #{discriminator_forward.5} parent=11 // pred_fallthru
          _
        // Predicated region
        $region17: #{discriminator_forward.5} parent=11 // pred_check
          %p128 = pneg %p70
        $region18: #{discriminator_forward.5} parent=11 // pred_check_branch
          %130 = sbr.rel (%p128) target = $region20
        $region19: #{discriminator_forward.5} parent=11 // pred_region
          %s132 = ssub.s32 1152, 1152
          %133 = vsyncadd [#allocation8], %s132
          %s134 = sshll.u32 [#allocation7], 4
          %s135 = int_to_ptr.vmem [resolvable:$true] %s134
          %140 = dma.hbm_to_vmem [thread:$0]  %s1, 1152, %s135, [#allocation8], 64, 64, 4
        $region20: #{discriminator_forward.5} parent=11 // pred_fallthru
          _
      $region12: #{discriminator_forward.5} parent=5 // pred_fallthru
        _
      %p141 = scmp.lt.s32.totalorder %s11, 2
      // Predicated region
      $region21: #{discriminator_forward.5} parent=5 // pred_check
        %p142 = pneg %p141
      $region22: #{discriminator_forward.5} parent=5 // pred_check_branch
        %144 = sbr.rel (%p142) target = $region24
      $region23: #{discriminator_forward.5} parent=5 // pred_region
        _
      $region24: #{discriminator_forward.5} parent=5 // pred_fallthru
        _
      %p145 = scmp.le.s32.totalorder 1, %s11
      %p146 = scmp.lt.s32.totalorder %s11, 3
      %p147 = pnand %p145, %p146
      %p148 = pneg %p147
      // Predicated region
      $region25: #{discriminator_forward.5} parent=5 // pred_check
        _
      $region26: #{discriminator_forward.5} parent=5 // pred_check_branch
        %150 = sbr.rel (%p147) target = $region28
      $region27: #{discriminator_forward.5} parent=5 // pred_region
        %s151 = ssub.s32 %s11, 1
        // Predicated region
        $region29: #{discriminator_forward.5} parent=27 // pred_check
          %p152 = pneg %p49
        $region30: #{discriminator_forward.5} parent=27 // pred_check_branch
          %154 = sbr.rel (%p152) target = $region32
        $region31: #{discriminator_forward.5} parent=27 // pred_region
          %155 = dma.done [#allocation5], 512
        $region32: #{discriminator_forward.5} parent=27 // pred_fallthru
          _
        // Predicated region
        $region33: #{discriminator_forward.5} parent=27 // pred_check
          %p156 = pneg %p70
        $region34: #{discriminator_forward.5} parent=27 // pred_check_branch
          %158 = sbr.rel (%p156) target = $region36
        $region35: #{discriminator_forward.5} parent=27 // pred_region
          %159 = dma.done [#allocation8], 1152
        $region36: #{discriminator_forward.5} parent=27 // pred_fallthru
          _
        %p160 = pneg %p49
        %p161 = pneg %p46
        %p162 = pneg %p70
        %p163 = pneg %p67
        %p164 = pneg %p96
        %p165 = pneg %p93
        %s166 = smul.u32 4, %s21
        %s167 = smul.u32 4, %s21
        %p169 = scmp.eq.s32.totalorder %s20, 0
        %p170 = scmp.eq.s32.totalorder %s21, 0
        %p171 = pnand %p169, %p170
        %p172 = pneg %p171
        // Predicated region
        $region37: #{discriminator_forward.5} parent=27 // pred_check
          _
        $region38: #{discriminator_forward.5} parent=27 // pred_check_branch
          %174 = sbr.rel (%p171) target = $region40
        $region39: #{discriminator_forward.5} parent=27 // pred_region
          %175 = vst [vmem:[#allocation2] sm:$0x1] 0.0
          %176 = vst [vmem:[#allocation3] sm:$0x1] 0.0
        $region40: #{discriminator_forward.5} parent=27 // pred_fallthru
          _
        %v177 = vld [vmem:[#allocation4] sm:$0xff]
        %v178 = vld [vmem:[#allocation4 + $0x8] sm:$0xff]
        %v179 = vld [vmem:[#allocation4 + $0x10] sm:$0xff]
        %v180 = vld [vmem:[#allocation4 + $0x18] sm:$0xff]
        %v181 = vld [vmem:[#allocation7] sm:$0xf]
        %v182 = vld [vmem:[#allocation7 + $0x4] sm:$0xf]
        %v183 = vld [vmem:[#allocation7 + $0x8] sm:$0xf]
        %v184 = vld [vmem:[#allocation7 + $0xc] sm:$0xf]
        %v185 = vld [vmem:[#allocation7 + $0x10] sm:$0xf]
        %v186 = vld [vmem:[#allocation7 + $0x14] sm:$0xf]
        %v187 = vld [vmem:[#allocation7 + $0x18] sm:$0xf]
        %v188 = vld [vmem:[#allocation7 + $0x1c] sm:$0xf]
        %v189 = vld [vmem:[#allocation7 + $0x20] sm:$0xf]
        %v190 = vld [vmem:[#allocation7 + $0x24] sm:$0xf]
        %v191 = vld [vmem:[#allocation7 + $0x28] sm:$0xf]
        %v192 = vld [vmem:[#allocation7 + $0x2c] sm:$0xf]
        %v193 = vld [vmem:[#allocation7 + $0x30] sm:$0xf]
        %v194 = vld [vmem:[#allocation7 + $0x34] sm:$0xf]
        %v195 = vld [vmem:[#allocation7 + $0x38] sm:$0xf]
        %v196 = vld [vmem:[#allocation7 + $0x3c] sm:$0xf]
        %v197 = vld [vmem:[#allocation7 + $0x40] sm:$0xf]
        %v198 = vld [vmem:[#allocation7 + $0x44] sm:$0xf]
        %v203 = vunpack.c.l.b16 %v177
        %v204 = vunpack.c.h.b16 %v177
        %v205 = vunpack.c.l.b16 %v178
        %v206 = vunpack.c.h.b16 %v178
        %v207 = vunpack.c.l.b16 %v179
        %v208 = vunpack.c.h.b16 %v179
        %v209 = vunpack.c.l.b16 %v180
        %v210 = vunpack.c.h.b16 %v180
        %v211 = vpack.c.b16 %v205, %v203
        %v212 = vpack.c.b16 %v206, %v204
        %v213 = vpack.c.b16 %v209, %v207
        %v214 = vpack.c.b16 %v210, %v208
        %v235 = vunpack.c.l.b16 %v181
        %v236 = vunpack.c.l.b16 %v182
        %v237 = vunpack.c.l.b16 %v183
        %v238 = vunpack.c.l.b16 %v184
        %v239 = vunpack.c.l.b16 %v185
        %v240 = vunpack.c.l.b16 %v186
        %v241 = vunpack.c.l.b16 %v187
        %v242 = vunpack.c.l.b16 %v188
        %v243 = vunpack.c.l.b16 %v189
        %v244 = vunpack.c.l.b16 %v190
        %v245 = vunpack.c.l.b16 %v191
        %v246 = vunpack.c.l.b16 %v192
        %v247 = vunpack.c.l.b16 %v193
        %v248 = vunpack.c.l.b16 %v194
        %v249 = vunpack.c.l.b16 %v195
        %v250 = vunpack.c.l.b16 %v196
        %v251 = vunpack.c.l.b16 %v197
        %v252 = vunpack.c.l.b16 %v198
        %v253 = vpack.c.b16 %v236, %v235
        %v254 = vpack.c.b16 %v238, %v237
        %v255 = vpack.c.b16 %v240, %v239
        %v256 = vpack.c.b16 %v242, %v241
        %v257 = vpack.c.b16 %v244, %v243
        %v258 = vpack.c.b16 %v246, %v245
        %v259 = vpack.c.b16 %v248, %v247
        %v260 = vpack.c.b16 %v250, %v249
        %v261 = vpack.c.b16 %v252, %v251
        %vm271 = vcmask 130048
        %v273 = vsel %vm271, %v212, 0
        %v276 = vsel %vm271, %v214, 0
        %278 = vmatprep.subr.bf16.mxu0 0
        %279 = vmatpush1.bf16.msra.mxu0 %v253
        %280 = vmatprep.subr.bf16.mxu0 0
        %281 = vmatpush1.bf16.msra.mxu0 %v254
        %282 = vmatprep.subr.bf16.mxu0 0
        %283 = vmatpush1.bf16.msra.mxu0 %v255
        %284 = vmatprep.subr.bf16.mxu0 0
        %285 = vmatpush1.bf16.msra.mxu0 %v256
        %286 = vmatprep.subr.bf16.mxu0 0
        %287 = vmatpush1.bf16.msra.mxu0 %v257
        %288 = vmatprep.subr.bf16.mxu0 0
        %289 = vmatpush1.bf16.msra.mxu0 %v258
        %290 = vmatprep.subr.bf16.mxu0 0
        %291 = vmatpush1.bf16.msra.mxu0 %v259
        %292 = vmatprep.subr.bf16.mxu0 0
        %293 = vmatpush1.bf16.msra.mxu0 %v260
        %294 = vmatprep.subr.bf16.mxu0 0
        %295 = vmatpush1.bf16.msra.mxu0 %v261
        %296 = vmatprep.subr.bf16.mxu0 0
        %297 = vmatpush1.bf16.msra.mxu0 0
        %298 = vmatprep.subr.bf16.mxu0 0
        %299 = vmatpush1.bf16.msra.mxu0 0
        %300 = vmatprep.subr.bf16.mxu0 0
        %301 = vmatpush1.bf16.msra.mxu0 0
        %302 = vmatprep.subr.bf16.mxu0 0
        %303 = vmatpush1.bf16.msra.mxu0 0
        %304 = vmatprep.subr.bf16.mxu0 0
        %305 = vmatpush1.bf16.msra.mxu0 0
        %306 = vmatprep.subr.bf16.mxu0 0
        %307 = vmatpush1.bf16.msra.mxu0 0
        %308 = vmatprep.subr.bf16.mxu0 0
        %309 = vmatpush1.bf16.msra.mxu0 0
        %310 = vmatprep.mubr.bf16.mxu0 %v273
        %311 = vmatmul.mubr.bf16.gmra.mrb[0].mxu0 %v211
        %v312 = vpop.f32.mrb[0].mxu0
        %v313 = vadd.f32 0.0, %v312
        %v314 = vpop.f32.mrb[0].mxu0
        %v315 = vpop.f32.mrb[0].mxu0
        %v316 = vadd.f32 0.0, %v315
        %v317 = vpop.f32.mrb[0].mxu0
        %318 = vmatprep.mubr.bf16.mxu0 %v276
        %319 = vmatmul.mubr.bf16.gmra.mrb[0].mxu0 %v213
        %v320 = vpop.f32.mrb[0].mxu0
        %v321 = vadd.f32 0.0, %v320
        %v322 = vpop.f32.mrb[0].mxu0
        %v323 = vpop.f32.mrb[0].mxu0
        %v324 = vadd.f32 0.0, %v323
        %v325 = vpop.f32.mrb[0].mxu0
        %326 = vdwg.mxu0
        %s327 = smul.u32 %s21, 32
        %v328 = vlaneseq
        %v329 = vshrl.u32 %v328, 7
        %v330 = vadd.s32 %v329, 8
        %v331 = vadd.s32 %v329, 16
        %v332 = vadd.s32 %v329, 24
        %v333 = vstv %s327
        %v334 = vadd.s32 %v333, %v329
        %v335 = vadd.s32 %v333, %v330
        %v336 = vadd.s32 %v333, %v331
        %v337 = vadd.s32 %v333, %v332
        %vm338 = vcmp.lt.s32.totalorder %v334, 32
        %vm339 = vcmp.lt.s32.totalorder %v335, 32
        %vm340 = vcmp.lt.s32.totalorder %v336, 32
        %vm341 = vcmp.lt.s32.totalorder %v337, 32
        // Predicated region
        $region41: #{discriminator_forward.5} parent=27 // pred_check
          %p342 = pneg %p169
        $region42: #{discriminator_forward.5} parent=27 // pred_check_branch
          %344 = sbr.rel (%p342) target = $region44
        $region43: #{discriminator_forward.5} parent=27 // pred_region
          %v345 = vsel %vm338, %v313, 0.0
          %v346 = vsel %vm339, %v316, 0.0
          %v347 = vsel %vm340, %v321, 0.0
          %v348 = vsel %vm341, %v324, 0.0
          %v349 = vld [vmem:[#allocation2] sm:$0x1]
          %v350 = vadd.f32 %v345, %v346
          %v351 = vadd.f32 %v350, %v347
          %v352 = vadd.f32 %v351, %v348
          %v353 = vrot.slane %v352, 4
          %v354 = vadd.f32 %v352, %v353
          %v355 = vrot.slane %v354, 2
          %v356 = vadd.f32 %v354, %v355
          %v357 = vrot.slane %v356, 1
          %v358 = vadd.f32 %v356, %v357
          %v359 = vadd.f32 %v349, %v358
          %360 = vst [vmem:[#allocation2] sm:$0x1] %v359
          %v361 = vld [vmem:[#allocation3] sm:$0x1]
          %v362 = vmul.f32 %v345, %v345
          %v363 = vmul.f32 %v346, %v346
          %v364 = vmul.f32 %v347, %v347
          %v365 = vmul.f32 %v348, %v348
          %v366 = vadd.f32 %v362, %v363
          %v367 = vadd.f32 %v366, %v364
          %v368 = vadd.f32 %v367, %v365
          %v369 = vrot.slane %v368, 4
          %v370 = vadd.f32 %v368, %v369
          %v371 = vrot.slane %v370, 2
          %v372 = vadd.f32 %v370, %v371
          %v373 = vrot.slane %v372, 1
          %v374 = vadd.f32 %v372, %v373
          %v375 = vadd.f32 %v361, %v374
          %376 = vst [vmem:[#allocation3] sm:$0x1] %v375
        $region44: #{discriminator_forward.5} parent=27 // pred_fallthru
          _
        %p377 = scmp.eq.s32.totalorder %s20, 1
        // Predicated region
        $region45: #{discriminator_forward.5} parent=27 // pred_check
          %p378 = pneg %p377
        $region46: #{discriminator_forward.5} parent=27 // pred_check_branch
          %380 = sbr.rel (%p378) target = $region48
        $region47: #{discriminator_forward.5} parent=27 // pred_region
          %v381 = vld [vmem:[#allocation2] sm:$0x1]
          %v382 = vmul.f32 %v381, 0.03125
          %v383 = vld [vmem:[#allocation3] sm:$0x1]
          %v384 = vmul.f32 %v383, 0.03125
          %v385 = vmul.f32 %v382, %v382
          %v386 = vsub.f32 %v384, %v385
          %v387 = vmax.f32 %v386, 0.0
          %v389 = vlaneseq
          %v390 = vshrl.u32 %v389, 7
          %v391 = vsub.s32 0, %v390
          %v392 = vrot.slane %v382, %v391
          %v394 = vsub.f32 %v313, %v392
          %v395 = vsub.f32 %v316, %v392
          %v396 = vsub.f32 %v321, %v392
          %v397 = vsub.f32 %v324, %v392
          %v398 = vadd.f32 %v387, 1e-05
          %v399 = vrsqrt.pop %v398
          %v401 = vlaneseq
          %v402 = vshrl.u32 %v401, 7
          %v403 = vsub.s32 0, %v402
          %v404 = vrot.slane %v399, %v403
          %v406 = vmul.f32 %v394, %v404
          %v407 = vmul.f32 %v395, %v404
          %v408 = vmul.f32 %v396, %v404
          %v409 = vmul.f32 %v397, %v404
          %v410 = vmul.f32 %v406, 0.2
          %v411 = vmul.f32 %v407, 0.2
          %v412 = vmul.f32 %v408, 0.2
          %v413 = vmul.f32 %v409, 0.2
          %v414 = vmax.f32 %v406, %v410
          %v415 = vmax.f32 %v407, %v411
          %v416 = vmax.f32 %v408, %v412
          %v417 = vmax.f32 %v409, %v413
          %v418 = vpack.c.bf16 %v415, %v414
          %v419 = vpack.c.bf16 %v417, %v416
          %v422 = vunpack.c.l.b16 %v418
          %v423 = vunpack.c.h.b16 %v418
          %v424 = vunpack.c.l.b16 %v419
          %v425 = vunpack.c.h.b16 %v419
          %v426 = vpack.c.b16 %v422, %v422
          %v427 = vpack.c.b16 %v423, %v423
          %v428 = vpack.c.b16 %v424, %v424
          %v429 = vpack.c.b16 %v425, %v425
          %434 = vst [vmem:[#allocation9] sm:$0xf] %v426
          %435 = vst [vmem:[#allocation9 + $0x4] sm:$0xf] %v427
          %436 = vst [vmem:[#allocation9 + $0x8] sm:$0xf] %v428
          %437 = vst [vmem:[#allocation9 + $0xc] sm:$0xf] %v429
        $region48: #{discriminator_forward.5} parent=27 // pred_fallthru
          _
        // Predicated region
        $region49: #{discriminator_forward.5} parent=27 // pred_check
          %p438 = pneg %p93
        $region50: #{discriminator_forward.5} parent=27 // pred_check_branch
          %440 = sbr.rel (%p438) target = $region52
        $region51: #{discriminator_forward.5} parent=27 // pred_region
          %s441 = smul.u32 4, %s21
          %s443 = ssub.s32 256, 256
          %444 = vsyncadd [#allocation6], %s443
          %s445 = smul.addr %s441, 64
          %s446 = scalar_lea.hbm %s2, %s445
          %s447 = sshll.u32 [#allocation9], 4
          %s448 = int_to_ptr.vmem [resolvable:$true] %s447
          %453 = dma.vmem_to_hbm [thread:$0]  %s448, 256, %s446, [#allocation6], 64, 64, 4
        $region52: #{discriminator_forward.5} parent=27 // pred_fallthru
          _
        // Predicated region
        $region53: #{discriminator_forward.5} parent=27 // pred_check
          %p454 = pneg %p93
        $region54: #{discriminator_forward.5} parent=27 // pred_check_branch
          %456 = sbr.rel (%p454) target = $region56
        $region55: #{discriminator_forward.5} parent=27 // pred_region
          %457 = dma.done [#allocation6], 256
        $region56: #{discriminator_forward.5} parent=27 // pred_fallthru
          _
      $region28: #{discriminator_forward.5} parent=5 // pred_fallthru
        _
      %p458 = scmp.le.s32.totalorder 2, %s11
      // Predicated region
      $region57: #{discriminator_forward.5} parent=5 // pred_check
        %p459 = pneg %p458
      $region58: #{discriminator_forward.5} parent=5 // pred_check_branch
        %461 = sbr.rel (%p459) target = $region60
      $region59: #{discriminator_forward.5} parent=5 // pred_region
        %s462 = ssub.s32 %s11, 2
      $region60: #{discriminator_forward.5} parent=5 // pred_fallthru
        _
    $region6: #{discriminator_forward.5} parent=1 // loop_footer
      %s15 = sadd.s32 1, %s11
    $region7: #{discriminator_forward.5} parent=1 // loop_footer_branch
      %10 = sbr.rel target = $region3
    $region8: #{discriminator_forward.5} parent=1 // loop_exit
      _
    %463 = vsyncpa [#allocation5], 1
    %s464 = scalar_lea.sflag [#allocation5], 1
    %465 = vsyncpa %s464, 1
    %466 = vsyncpa [#allocation8], 1
    %467 = vsyncpa [#allocation6], 1
    %s468 = scalar_lea.sflag [#allocation6], 1
    %469 = vsyncpa %s468, 1

// kernel: discriminator_forward.7
$region0: #{discriminator_forward.7}
  #allocation0 [shape = 'u32[]', space=smem, size = 0x4, offset = 0x4, fixed_abs, tag = 'smem constant byte address 0x4 - core index']
  #allocation1 [shape = 'u32[144,128]{1,0:T(1,128)}', space=vmem, size = 0x12000, scoped, tag = 'internal scratch']
  %s0 = inlined_call_operand.hbm [shape: bf16[2,256], index: 0, kind: input, shape index: {}]
  %s1 = inlined_call_operand.hbm [shape: bf16[256,128], index: 1, kind: input, shape index: {}]
  %s2 = inlined_call_operand.hbm [shape: bf16[128,256], index: 2, kind: input, shape index: {}]
  %s3 = inlined_call_operand.hbm [shape: bf16[256,128], index: 3, kind: input, shape index: {}]
  %s4 = inlined_call_operand.hbm [shape: f32[2,128], index: 4, kind: output, shape index: {}]
  %s5 = sld [smem:[#allocation0]]
  $region42: #{discriminator_forward.7} parent=0
    _
  %s7 = ssub.s32 1, %s5
  %s8 = scalar_select 0, %s7, %s5
  $region1: #{discriminator_forward.7} parent=0
    #allocation2 [shape = 'u8[1024]{0}', space=vmem, size = 0x400, scoped, tag = 'input window, operand 0, single buffered']
    #allocation3 [shape = 's32[1]{0}', space=sflag, size = 0x4, scoped, tag = 'scoped memory for discriminator_forward.7']
    #allocation4 [shape = 's32[1]{0}', space=sflag, size = 0x4, scoped, tag = 'scoped memory for discriminator_forward.7']
    #allocation5 [shape = 'u8[65536]{0}', space=vmem, size = 0x10000, scoped, tag = 'input window, operand 1, single buffered']
    #allocation6 [shape = 's32[1]{0}', space=sflag, size = 0x4, scoped, tag = 'scoped memory for discriminator_forward.7']
    #allocation7 [shape = 'u8[65536]{0}', space=vmem, size = 0x10000, scoped, tag = 'input window, operand 2, single buffered']
    #allocation8 [shape = 'u8[65536]{0}', space=vmem, size = 0x10000, scoped, tag = 'input window, operand 3, single buffered']
    #allocation9 [shape = 's32[1]{0}', space=sflag, size = 0x4, scoped, tag = 'scoped memory for discriminator_forward.7']
    #allocation10 [shape = 'u8[1024]{0}', space=vmem, size = 0x400, scoped, tag = 'output window, operand 0, single buffered']
    %9 = vsyncpa [#allocation3], 0
    %10 = vsyncpa [#allocation6], 0
    %11 = vsyncpa [#allocation9], 0
    %12 = vsyncpa [#allocation4], 0
    // Predicated region
    $region2: #{discriminator_forward.7} parent=1 // pred_check
      _
    $region3: #{discriminator_forward.7} parent=1 // pred_check_branch
      %14 = sbr.rel (0) target = $region5
    $region4: #{discriminator_forward.7} parent=1 // pred_region
      %s16 = ssub.s32 32, 32
      %17 = vsyncadd [#allocation3], %s16
      %s19 = sshll.u32 [#allocation2], 4
      %s20 = int_to_ptr.vmem [resolvable:$true] %s19
      %22 = dma.hbm_to_vmem [thread:$0]  %s0, 32, %s20, [#allocation3]
    $region5: #{discriminator_forward.7} parent=1 // pred_fallthru
      _
    // Predicated region
    $region6: #{discriminator_forward.7} parent=1 // pred_check
      _
    $region7: #{discriminator_forward.7} parent=1 // pred_check_branch
      %24 = sbr.rel (0) target = $region9
    $region8: #{discriminator_forward.7} parent=1 // pred_region
      %s26 = ssub.s32 2048, 2048
      %27 = vsyncadd [#allocation6], %s26
      %s28 = sshll.u32 [#allocation5], 4
      %s29 = int_to_ptr.vmem [resolvable:$true] %s28
      %34 = dma.hbm_to_vmem [thread:$0]  %s1, 2048, %s29, [#allocation6], 64, 64, 4
    $region9: #{discriminator_forward.7} parent=1 // pred_fallthru
      _
    // Predicated region
    $region10: #{discriminator_forward.7} parent=1 // pred_check
      _
    $region11: #{discriminator_forward.7} parent=1 // pred_check_branch
      %36 = sbr.rel (0) target = $region13
    $region12: #{discriminator_forward.7} parent=1 // pred_region
      %s38 = ssub.s32 2048, 2048
      %39 = vsyncadd [#allocation6], %s38
      %s40 = sshll.u32 [#allocation7], 4
      %s41 = int_to_ptr.vmem [resolvable:$true] %s40
      %46 = dma.hbm_to_vmem [thread:$0]  %s2, 2048, %s41, [#allocation6], 128, 128, 8
    $region13: #{discriminator_forward.7} parent=1 // pred_fallthru
      _
    // Predicated region
    $region14: #{discriminator_forward.7} parent=1 // pred_check
      _
    $region15: #{discriminator_forward.7} parent=1 // pred_check_branch
      %48 = sbr.rel (0) target = $region17
    $region16: #{discriminator_forward.7} parent=1 // pred_region
      %s50 = ssub.s32 2048, 2048
      %51 = vsyncadd [#allocation9], %s50
      %s52 = sshll.u32 [#allocation8], 4
      %s53 = int_to_ptr.vmem [resolvable:$true] %s52
      %58 = dma.hbm_to_vmem [thread:$0]  %s3, 2048, %s53, [#allocation9], 64, 64, 4
    $region17: #{discriminator_forward.7} parent=1 // pred_fallthru
      _
    // Predicated region
    $region18: #{discriminator_forward.7} parent=1 // pred_check
      _
    $region19: #{discriminator_forward.7} parent=1 // pred_check_branch
      %60 = sbr.rel (0) target = $region21
    $region20: #{discriminator_forward.7} parent=1 // pred_region
      %61 = dma.done [#allocation3], 32
    $region21: #{discriminator_forward.7} parent=1 // pred_fallthru
      _
    // Predicated region
    $region22: #{discriminator_forward.7} parent=1 // pred_check
      _
    $region23: #{discriminator_forward.7} parent=1 // pred_check_branch
      %63 = sbr.rel (0) target = $region25
    $region24: #{discriminator_forward.7} parent=1 // pred_region
      %64 = dma.done [#allocation6], 2048
    $region25: #{discriminator_forward.7} parent=1 // pred_fallthru
      _
    // Predicated region
    $region26: #{discriminator_forward.7} parent=1 // pred_check
      _
    $region27: #{discriminator_forward.7} parent=1 // pred_check_branch
      %66 = sbr.rel (0) target = $region29
    $region28: #{discriminator_forward.7} parent=1 // pred_region
      %67 = dma.done [#allocation6], 2048
    $region29: #{discriminator_forward.7} parent=1 // pred_fallthru
      _
    // Predicated region
    $region30: #{discriminator_forward.7} parent=1 // pred_check
      _
    $region31: #{discriminator_forward.7} parent=1 // pred_check_branch
      %69 = sbr.rel (0) target = $region33
    $region32: #{discriminator_forward.7} parent=1 // pred_region
      %70 = dma.done [#allocation9], 2048
    $region33: #{discriminator_forward.7} parent=1 // pred_fallthru
      _
    %v72 = vld [vmem:[#allocation2] sm:$0x3]
    %v73 = vld [vmem:[#allocation5] sm:$0xf]
    %v74 = vld [vmem:[#allocation5 + $0x4] sm:$0xf]
    %v75 = vld [vmem:[#allocation5 + $0x8] sm:$0xf]
    %v76 = vld [vmem:[#allocation5 + $0xc] sm:$0xf]
    %v77 = vld [vmem:[#allocation5 + $0x10] sm:$0xf]
    %v78 = vld [vmem:[#allocation5 + $0x14] sm:$0xf]
    %v79 = vld [vmem:[#allocation5 + $0x18] sm:$0xf]
    %v80 = vld [vmem:[#allocation5 + $0x1c] sm:$0xf]
    %v81 = vld [vmem:[#allocation5 + $0x20] sm:$0xf]
    %v82 = vld [vmem:[#allocation5 + $0x24] sm:$0xf]
    %v83 = vld [vmem:[#allocation5 + $0x28] sm:$0xf]
    %v84 = vld [vmem:[#allocation5 + $0x2c] sm:$0xf]
    %v85 = vld [vmem:[#allocation5 + $0x30] sm:$0xf]
    %v86 = vld [vmem:[#allocation5 + $0x34] sm:$0xf]
    %v87 = vld [vmem:[#allocation5 + $0x38] sm:$0xf]
    %v88 = vld [vmem:[#allocation5 + $0x3c] sm:$0xf]
    %v89 = vld [vmem:[#allocation5 + $0x40] sm:$0xf]
    %v90 = vld [vmem:[#allocation5 + $0x44] sm:$0xf]
    %v91 = vld [vmem:[#allocation5 + $0x48] sm:$0xf]
    %v92 = vld [vmem:[#allocation5 + $0x4c] sm:$0xf]
    %v93 = vld [vmem:[#allocation5 + $0x50] sm:$0xf]
    %v94 = vld [vmem:[#allocation5 + $0x54] sm:$0xf]
    %v95 = vld [vmem:[#allocation5 + $0x58] sm:$0xf]
    %v96 = vld [vmem:[#allocation5 + $0x5c] sm:$0xf]
    %v97 = vld [vmem:[#allocation5 + $0x60] sm:$0xf]
    %v98 = vld [vmem:[#allocation5 + $0x64] sm:$0xf]
    %v99 = vld [vmem:[#allocation5 + $0x68] sm:$0xf]
    %v100 = vld [vmem:[#allocation5 + $0x6c] sm:$0xf]
    %v101 = vld [vmem:[#allocation5 + $0x70] sm:$0xf]
    %v102 = vld [vmem:[#allocation5 + $0x74] sm:$0xf]
    %v103 = vld [vmem:[#allocation5 + $0x78] sm:$0xf]
    %v104 = vld [vmem:[#allocation5 + $0x7c] sm:$0xf]
    %v107 = vunpack.c.l.s4 1966171168
    %v108 = vunpack.c.0.s8 %v107
    %v109 = vlaneseq
    %v110 = vshrl.u32 %v109, 7
    %v111 = vsub.s32 %v108, %v110
    %v112 = vrot.slane %v72, %v111
    %v113 = vcombine.high %v112, %v112
    %v115 = vunpack.c.l.s4 1966171168
    %v116 = vunpack.c.0.s8 %v115
    %v117 = vlaneseq
    %v118 = vshrl.u32 %v117, 7
    %v119 = vsub.s32 %v116, %v118
    %v120 = vrot.slane %v112, %v119
    %v122 = vunpack.c.l.s4 1966171168
    %v123 = vunpack.c.0.s8 %v122
    %v124 = vlaneseq
    %v125 = vshrl.u32 %v124, 7
    %v126 = vsub.s32 %v123, %v125
    %v127 = vrot.slane %v113, %v126
    %v162 = vunpack.c.l.b16 %v73
    %v163 = vunpack.c.l.b16 %v74
    %v164 = vunpack.c.l.b16 %v75
    %v165 = vunpack.c.l.b16 %v76
    %v166 = vunpack.c.l.b16 %v77
    %v167 = vunpack.c.l.b16 %v78
    %v168 = vunpack.c.l.b16 %v79
    %v169 = vunpack.c.l.b16 %v80
    %v170 = vunpack.c.l.b16 %v81
    %v171 = vunpack.c.l.b16 %v82
    %v172 = vunpack.c.l.b16 %v83
    %v173 = vunpack.c.l.b16 %v84
    %v174 = vunpack.c.l.b16 %v85
    %v175 = vunpack.c.l.b16 %v86
    %v176 = vunpack.c.l.b16 %v87
    %v177 = vunpack.c.l.b16 %v88
    %v178 = vunpack.c.l.b16 %v89
    %v179 = vunpack.c.l.b16 %v90
    %v180 = vunpack.c.l.b16 %v91
    %v181 = vunpack.c.l.b16 %v92
    %v182 = vunpack.c.l.b16 %v93
    %v183 = vunpack.c.l.b16 %v94
    %v184 = vunpack.c.l.b16 %v95
    %v185 = vunpack.c.l.b16 %v96
    %v186 = vunpack.c.l.b16 %v97
    %v187 = vunpack.c.l.b16 %v98
    %v188 = vunpack.c.l.b16 %v99
    %v189 = vunpack.c.l.b16 %v100
    %v190 = vunpack.c.l.b16 %v101
    %v191 = vunpack.c.l.b16 %v102
    %v192 = vunpack.c.l.b16 %v103
    %v193 = vunpack.c.l.b16 %v104
    %v194 = vpack.c.b16 %v163, %v162
    %v195 = vpack.c.b16 %v165, %v164
    %v196 = vpack.c.b16 %v167, %v166
    %v197 = vpack.c.b16 %v169, %v168
    %v198 = vpack.c.b16 %v171, %v170
    %v199 = vpack.c.b16 %v173, %v172
    %v200 = vpack.c.b16 %v175, %v174
    %v201 = vpack.c.b16 %v177, %v176
    %v202 = vpack.c.b16 %v179, %v178
    %v203 = vpack.c.b16 %v181, %v180
    %v204 = vpack.c.b16 %v183, %v182
    %v205 = vpack.c.b16 %v185, %v184
    %v206 = vpack.c.b16 %v187, %v186
    %v207 = vpack.c.b16 %v189, %v188
    %v208 = vpack.c.b16 %v191, %v190
    %v209 = vpack.c.b16 %v193, %v192
    %226 = vmatprep.subr.bf16.mxu0 0
    %227 = vmatpush1.bf16.msra.mxu0 %v194
    %228 = vmatprep.subr.bf16.mxu0 0
    %229 = vmatpush1.bf16.msra.mxu0 %v195
    %230 = vmatprep.subr.bf16.mxu0 0
    %231 = vmatpush1.bf16.msra.mxu0 %v196
    %232 = vmatprep.subr.bf16.mxu0 0
    %233 = vmatpush1.bf16.msra.mxu0 %v197
    %234 = vmatprep.subr.bf16.mxu0 0
    %235 = vmatpush1.bf16.msra.mxu0 %v198
    %236 = vmatprep.subr.bf16.mxu0 0
    %237 = vmatpush1.bf16.msra.mxu0 %v199
    %238 = vmatprep.subr.bf16.mxu0 0
    %239 = vmatpush1.bf16.msra.mxu0 %v200
    %240 = vmatprep.subr.bf16.mxu0 0
    %241 = vmatpush1.bf16.msra.mxu0 %v201
    %242 = vmatprep.subr.bf16.mxu0 0
    %243 = vmatpush1.bf16.msra.mxu0 %v202
    %244 = vmatprep.subr.bf16.mxu0 0
    %245 = vmatpush1.bf16.msra.mxu0 %v203
    %246 = vmatprep.subr.bf16.mxu0 0
    %247 = vmatpush1.bf16.msra.mxu0 %v204
    %248 = vmatprep.subr.bf16.mxu0 0
    %249 = vmatpush1.bf16.msra.mxu0 %v205
    %250 = vmatprep.subr.bf16.mxu0 0
    %251 = vmatpush1.bf16.msra.mxu0 %v206
    %252 = vmatprep.subr.bf16.mxu0 0
    %253 = vmatpush1.bf16.msra.mxu0 %v207
    %254 = vmatprep.subr.bf16.mxu0 0
    %255 = vmatpush1.bf16.msra.mxu0 %v208
    %256 = vmatprep.subr.bf16.mxu0 0
    %257 = vmatpush1.bf16.msra.mxu0 %v209
    %258 = vmatprep.mubr.bf16.mxu0 %v127
    %259 = vmatmul.mubr.bf16.gmra.mrb[0].mxu0 %v120
    %v260 = vpop.f32.mrb[0].mxu0
    %v261 = vadd.f32 0.0, %v260
    %v262 = vpop.f32.mrb[0].mxu0
    %v263 = vpop.f32.mrb[0].mxu0
    %v264 = vpop.f32.mrb[0].mxu0
    %265 = vdwg.mxu0
    %vm266 = vcmask 1041408
    %v267 = vsel %vm266, %v261, 0.0
    %v268 = vrot.slane %v267, 4
    %v269 = vadd.f32 %v267, %v268
    %v270 = vrot.slane %v269, 2
    %v271 = vadd.f32 %v269, %v270
    %v272 = vrot.slane %v271, 1
    %v273 = vadd.f32 %v271, %v272
    %v274 = vrcp.pop 2.0
    %v275 = vmul.f32 %v273, %v274
    %v276 = vsub.f32 %v261, %v275
    %v277 = vmul.f32 %v276, %v276
    %v278 = vsel %vm266, %v277, 0.0
    %v279 = vrot.slane %v278, 4
    %v280 = vadd.f32 %v278, %v279
    %v281 = vrot.slane %v280, 2
    %v282 = vadd.f32 %v280, %v281
    %v283 = vrot.slane %v282, 1
    %v284 = vadd.f32 %v282, %v283
    %v285 = vmul.f32 %v284, %v274
    %v286 = vadd.f32 %v285, 1e-05
    %v287 = vrsqrt.pop %v286
    %v288 = vmul.f32 %v276, %v287
    %v289 = vmul.f32 %v288, 0.2
    %v290 = vmax.f32 %v288, %v289
    %v291 = vpack.c.bf16 %v290, %v290
    %v292 = vld [vmem:[#allocation7] sm:$0xff]
    %v293 = vld [vmem:[#allocation7 + $0x8] sm:$0xff]
    %v294 = vld [vmem:[#allocation7 + $0x10] sm:$0xff]
    %v295 = vld [vmem:[#allocation7 + $0x18] sm:$0xff]
    %v296 = vld [vmem:[#allocation7 + $0x20] sm:$0xff]
    %v297 = vld [vmem:[#allocation7 + $0x28] sm:$0xff]
    %v298 = vld [vmem:[#allocation7 + $0x30] sm:$0xff]
    %v299 = vld [vmem:[#allocation7 + $0x38] sm:$0xff]
    %v300 = vld [vmem:[#allocation7 + $0x40] sm:$0xff]
    %v301 = vld [vmem:[#allocation7 + $0x48] sm:$0xff]
    %v302 = vld [vmem:[#allocation7 + $0x50] sm:$0xff]
    %v303 = vld [vmem:[#allocation7 + $0x58] sm:$0xff]
    %v304 = vld [vmem:[#allocation7 + $0x60] sm:$0xff]
    %v305 = vld [vmem:[#allocation7 + $0x68] sm:$0xff]
    %v306 = vld [vmem:[#allocation7 + $0x70] sm:$0xff]
    %v307 = vld [vmem:[#allocation7 + $0x78] sm:$0xff]
    %v324 = vunpack.c.l.b16 %v292
    %v325 = vunpack.c.h.b16 %v292
    %v326 = vunpack.c.l.b16 %v293
    %v327 = vunpack.c.h.b16 %v293
    %v328 = vunpack.c.l.b16 %v294
    %v329 = vunpack.c.h.b16 %v294
    %v330 = vunpack.c.l.b16 %v295
    %v331 = vunpack.c.h.b16 %v295
    %v332 = vunpack.c.l.b16 %v296
    %v333 = vunpack.c.h.b16 %v296
    %v334 = vunpack.c.l.b16 %v297
    %v335 = vunpack.c.h.b16 %v297
    %v336 = vunpack.c.l.b16 %v298
    %v337 = vunpack.c.h.b16 %v298
    %v338 = vunpack.c.l.b16 %v299
    %v339 = vunpack.c.h.b16 %v299
    %v340 = vunpack.c.l.b16 %v300
    %v341 = vunpack.c.h.b16 %v300
    %v342 = vunpack.c.l.b16 %v301
    %v343 = vunpack.c.h.b16 %v301
    %v344 = vunpack.c.l.b16 %v302
    %v345 = vunpack.c.h.b16 %v302
    %v346 = vunpack.c.l.b16 %v303
    %v347 = vunpack.c.h.b16 %v303
    %v348 = vunpack.c.l.b16 %v304
    %v349 = vunpack.c.h.b16 %v304
    %v350 = vunpack.c.l.b16 %v305
    %v351 = vunpack.c.h.b16 %v305
    %v352 = vunpack.c.l.b16 %v306
    %v353 = vunpack.c.h.b16 %v306
    %v354 = vunpack.c.l.b16 %v307
    %v355 = vunpack.c.h.b16 %v307
    %v356 = vpack.c.b16 %v326, %v324
    %v357 = vpack.c.b16 %v327, %v325
    %v358 = vpack.c.b16 %v330, %v328
    %v359 = vpack.c.b16 %v331, %v329
    %v360 = vpack.c.b16 %v334, %v332
    %v361 = vpack.c.b16 %v335, %v333
    %v362 = vpack.c.b16 %v338, %v336
    %v363 = vpack.c.b16 %v339, %v337
    %v364 = vpack.c.b16 %v342, %v340
    %v365 = vpack.c.b16 %v343, %v341
    %v366 = vpack.c.b16 %v346, %v344
    %v367 = vpack.c.b16 %v347, %v345
    %v368 = vpack.c.b16 %v350, %v348
    %v369 = vpack.c.b16 %v351, %v349
    %v370 = vpack.c.b16 %v354, %v352
    %v371 = vpack.c.b16 %v355, %v353
    %388 = vmatprep.subr.bf16.mxu0 %v357
    %389 = vmatpush1.bf16.msra.mxu0 %v356
    %390 = vmatprep.subr.bf16.mxu0 %v359
    %391 = vmatpush1.bf16.msra.mxu0 %v358
    %392 = vmatprep.subr.bf16.mxu0 %v361
    %393 = vmatpush1.bf16.msra.mxu0 %v360
    %394 = vmatprep.subr.bf16.mxu0 %v363
    %395 = vmatpush1.bf16.msra.mxu0 %v362
    %396 = vmatprep.subr.bf16.mxu0 %v365
    %397 = vmatpush1.bf16.msra.mxu0 %v364
    %398 = vmatprep.subr.bf16.mxu0 %v367
    %399 = vmatpush1.bf16.msra.mxu0 %v366
    %400 = vmatprep.subr.bf16.mxu0 %v369
    %401 = vmatpush1.bf16.msra.mxu0 %v368
    %402 = vmatprep.subr.bf16.mxu0 %v371
    %403 = vmatpush1.bf16.msra.mxu0 %v370
    %404 = vmatprep.subr.bf16.mxu0 0
    %405 = vmatpush1.bf16.msra.mxu0 0
    %406 = vmatprep.subr.bf16.mxu0 0
    %407 = vmatpush1.bf16.msra.mxu0 0
    %408 = vmatprep.subr.bf16.mxu0 0
    %409 = vmatpush1.bf16.msra.mxu0 0
    %410 = vmatprep.subr.bf16.mxu0 0
    %411 = vmatpush1.bf16.msra.mxu0 0
    %412 = vmatprep.subr.bf16.mxu0 0
    %413 = vmatpush1.bf16.msra.mxu0 0
    %414 = vmatprep.subr.bf16.mxu0 0
    %415 = vmatpush1.bf16.msra.mxu0 0
    %416 = vmatprep.subr.bf16.mxu0 0
    %417 = vmatpush1.bf16.msra.mxu0 0
    %418 = vmatprep.subr.bf16.mxu0 0
    %419 = vmatpush1.bf16.msra.mxu0 0
    %420 = vmatprep.mubr.bf16.mxu0 0
    %421 = vmatmul.mubr.bf16.gmra.mrb[0].mxu0 %v291
    %v422 = vpop.f32.mrb[0].mxu0
    %v423 = vadd.f32 0.0, %v422
    %v424 = vpop.f32.mrb[0].mxu0
    %v425 = vadd.f32 0.0, %v424
    %v426 = vpop.f32.mrb[0].mxu0
    %v427 = vpop.f32.mrb[0].mxu0
    %428 = vdwg.mxu0
    %v429 = vsel %vm266, %v423, 0.0
    %v430 = vrot.slane %v429, 4
    %v431 = vadd.f32 %v429, %v430
    %v432 = vrot.slane %v431, 2
    %v433 = vadd.f32 %v431, %v432
    %v434 = vrot.slane %v433, 1
    %v435 = vadd.f32 %v433, %v434
    %v436 = vsel %vm266, %v425, 0.0
    %v437 = vrot.slane %v436, 4
    %v438 = vadd.f32 %v436, %v437
    %v439 = vrot.slane %v438, 2
    %v440 = vadd.f32 %v438, %v439
    %v441 = vrot.slane %v440, 1
    %v442 = vadd.f32 %v440, %v441
    %v443 = vmul.f32 %v435, %v274
    %v444 = vmul.f32 %v442, %v274
    %v445 = vsub.f32 %v423, %v443
    %v446 = vsub.f32 %v425, %v444
    %v447 = vmul.f32 %v445, %v445
    %v448 = vmul.f32 %v446, %v446
    %v449 = vsel %vm266, %v447, 0.0
    %v450 = vrot.slane %v449, 4
    %v451 = vadd.f32 %v449, %v450
    %v452 = vrot.slane %v451, 2
    %v453 = vadd.f32 %v451, %v452
    %v454 = vrot.slane %v453, 1
    %v455 = vadd.f32 %v453, %v454
    %v456 = vsel %vm266, %v448, 0.0
    %v457 = vrot.slane %v456, 4
    %v458 = vadd.f32 %v456, %v457
    %v459 = vrot.slane %v458, 2
    %v460 = vadd.f32 %v458, %v459
    %v461 = vrot.slane %v460, 1
    %v462 = vadd.f32 %v460, %v461
    %v463 = vmul.f32 %v455, %v274
    %v464 = vmul.f32 %v462, %v274
    %v465 = vadd.f32 %v463, 1e-05
    %v466 = vadd.f32 %v464, 1e-05
    %v467 = vrsqrt.pop %v465
    %v468 = vrsqrt.pop %v466
    %v469 = vmul.f32 %v445, %v467
    %v470 = vmul.f32 %v446, %v468
    %v471 = vmul.f32 %v469, 0.2
    %v472 = vmul.f32 %v470, 0.2
    %v473 = vmax.f32 %v469, %v471
    %v474 = vmax.f32 %v470, %v472
    %v475 = vpack.c.bf16 %v473, %v473
    %v476 = vpack.c.bf16 %v474, %v474
    %v477 = vld [vmem:[#allocation8] sm:$0xf]
    %v478 = vld [vmem:[#allocation8 + $0x4] sm:$0xf]
    %v479 = vld [vmem:[#allocation8 + $0x8] sm:$0xf]
    %v480 = vld [vmem:[#allocation8 + $0xc] sm:$0xf]
    %v481 = vld [vmem:[#allocation8 + $0x10] sm:$0xf]
    %v482 = vld [vmem:[#allocation8 + $0x14] sm:$0xf]
    %v483 = vld [vmem:[#allocation8 + $0x18] sm:$0xf]
    %v484 = vld [vmem:[#allocation8 + $0x1c] sm:$0xf]
    %v485 = vld [vmem:[#allocation8 + $0x20] sm:$0xf]
    %v486 = vld [vmem:[#allocation8 + $0x24] sm:$0xf]
    %v487 = vld [vmem:[#allocation8 + $0x28] sm:$0xf]
    %v488 = vld [vmem:[#allocation8 + $0x2c] sm:$0xf]
    %v489 = vld [vmem:[#allocation8 + $0x30] sm:$0xf]
    %v490 = vld [vmem:[#allocation8 + $0x34] sm:$0xf]
    %v491 = vld [vmem:[#allocation8 + $0x38] sm:$0xf]
    %v492 = vld [vmem:[#allocation8 + $0x3c] sm:$0xf]
    %v493 = vld [vmem:[#allocation8 + $0x40] sm:$0xf]
    %v494 = vld [vmem:[#allocation8 + $0x44] sm:$0xf]
    %v495 = vld [vmem:[#allocation8 + $0x48] sm:$0xf]
    %v496 = vld [vmem:[#allocation8 + $0x4c] sm:$0xf]
    %v497 = vld [vmem:[#allocation8 + $0x50] sm:$0xf]
    %v498 = vld [vmem:[#allocation8 + $0x54] sm:$0xf]
    %v499 = vld [vmem:[#allocation8 + $0x58] sm:$0xf]
    %v500 = vld [vmem:[#allocation8 + $0x5c] sm:$0xf]
    %v501 = vld [vmem:[#allocation8 + $0x60] sm:$0xf]
    %v502 = vld [vmem:[#allocation8 + $0x64] sm:$0xf]
    %v503 = vld [vmem:[#allocation8 + $0x68] sm:$0xf]
    %v504 = vld [vmem:[#allocation8 + $0x6c] sm:$0xf]
    %v505 = vld [vmem:[#allocation8 + $0x70] sm:$0xf]
    %v506 = vld [vmem:[#allocation8 + $0x74] sm:$0xf]
    %v507 = vld [vmem:[#allocation8 + $0x78] sm:$0xf]
    %v508 = vld [vmem:[#allocation8 + $0x7c] sm:$0xf]
    %v541 = vunpack.c.l.b16 %v477
    %v542 = vunpack.c.l.b16 %v478
    %v543 = vunpack.c.l.b16 %v479
    %v544 = vunpack.c.l.b16 %v480
    %v545 = vunpack.c.l.b16 %v481
    %v546 = vunpack.c.l.b16 %v482
    %v547 = vunpack.c.l.b16 %v483
    %v548 = vunpack.c.l.b16 %v484
    %v549 = vunpack.c.l.b16 %v485
    %v550 = vunpack.c.l.b16 %v486
    %v551 = vunpack.c.l.b16 %v487
    %v552 = vunpack.c.l.b16 %v488
    %v553 = vunpack.c.l.b16 %v489
    %v554 = vunpack.c.l.b16 %v490
    %v555 = vunpack.c.l.b16 %v491
    %v556 = vunpack.c.l.b16 %v492
    %v557 = vunpack.c.l.b16 %v493
    %v558 = vunpack.c.l.b16 %v494
    %v559 = vunpack.c.l.b16 %v495
    %v560 = vunpack.c.l.b16 %v496
    %v561 = vunpack.c.l.b16 %v497
    %v562 = vunpack.c.l.b16 %v498
    %v563 = vunpack.c.l.b16 %v499
    %v564 = vunpack.c.l.b16 %v500
    %v565 = vunpack.c.l.b16 %v501
    %v566 = vunpack.c.l.b16 %v502
    %v567 = vunpack.c.l.b16 %v503
    %v568 = vunpack.c.l.b16 %v504
    %v569 = vunpack.c.l.b16 %v505
    %v570 = vunpack.c.l.b16 %v506
    %v571 = vunpack.c.l.b16 %v507
    %v572 = vunpack.c.l.b16 %v508
    %v573 = vpack.c.b16 %v542, %v541
    %v574 = vpack.c.b16 %v544, %v543
    %v575 = vpack.c.b16 %v546, %v545
    %v576 = vpack.c.b16 %v548, %v547
    %v577 = vpack.c.b16 %v550, %v549
    %v578 = vpack.c.b16 %v552, %v551
    %v579 = vpack.c.b16 %v554, %v553
    %v580 = vpack.c.b16 %v556, %v555
    %v581 = vpack.c.b16 %v558, %v557
    %v582 = vpack.c.b16 %v560, %v559
    %v583 = vpack.c.b16 %v562, %v561
    %v584 = vpack.c.b16 %v564, %v563
    %v585 = vpack.c.b16 %v566, %v565
    %v586 = vpack.c.b16 %v568, %v567
    %v587 = vpack.c.b16 %v570, %v569
    %v588 = vpack.c.b16 %v572, %v571
    %605 = vmatprep.subr.bf16.mxu0 0
    %606 = vmatpush1.bf16.msra.mxu0 %v573
    %607 = vmatprep.subr.bf16.mxu0 0
    %608 = vmatpush1.bf16.msra.mxu0 %v574
    %609 = vmatprep.subr.bf16.mxu0 0
    %610 = vmatpush1.bf16.msra.mxu0 %v575
    %611 = vmatprep.subr.bf16.mxu0 0
    %612 = vmatpush1.bf16.msra.mxu0 %v576
    %613 = vmatprep.subr.bf16.mxu0 0
    %614 = vmatpush1.bf16.msra.mxu0 %v577
    %615 = vmatprep.subr.bf16.mxu0 0
    %616 = vmatpush1.bf16.msra.mxu0 %v578
    %617 = vmatprep.subr.bf16.mxu0 0
    %618 = vmatpush1.bf16.msra.mxu0 %v579
    %619 = vmatprep.subr.bf16.mxu0 0
    %620 = vmatpush1.bf16.msra.mxu0 %v580
    %621 = vmatprep.subr.bf16.mxu0 0
    %622 = vmatpush1.bf16.msra.mxu0 %v581
    %623 = vmatprep.subr.bf16.mxu0 0
    %624 = vmatpush1.bf16.msra.mxu0 %v582
    %625 = vmatprep.subr.bf16.mxu0 0
    %626 = vmatpush1.bf16.msra.mxu0 %v583
    %627 = vmatprep.subr.bf16.mxu0 0
    %628 = vmatpush1.bf16.msra.mxu0 %v584
    %629 = vmatprep.subr.bf16.mxu0 0
    %630 = vmatpush1.bf16.msra.mxu0 %v585
    %631 = vmatprep.subr.bf16.mxu0 0
    %632 = vmatpush1.bf16.msra.mxu0 %v586
    %633 = vmatprep.subr.bf16.mxu0 0
    %634 = vmatpush1.bf16.msra.mxu0 %v587
    %635 = vmatprep.subr.bf16.mxu0 0
    %636 = vmatpush1.bf16.msra.mxu0 %v588
    %637 = vmatprep.mubr.bf16.mxu0 %v476
    %638 = vmatmul.mubr.bf16.gmra.mrb[0].mxu0 %v475
    %v639 = vpop.f32.mrb[0].mxu0
    %v640 = vadd.f32 0.0, %v639
    %v641 = vpop.f32.mrb[0].mxu0
    %v642 = vpop.f32.mrb[0].mxu0
    %v643 = vpop.f32.mrb[0].mxu0
    %644 = vdwg.mxu0
    %645 = vst [vmem:[#allocation10] sm:$0x3] %v640
    // Predicated region
    $region34: #{discriminator_forward.7} parent=1 // pred_check
      _
    $region35: #{discriminator_forward.7} parent=1 // pred_check_branch
      %647 = sbr.rel (0) target = $region37
    $region36: #{discriminator_forward.7} parent=1 // pred_region
      %s649 = ssub.s32 32, 32
      %650 = vsyncadd [#allocation4], %s649
      %s652 = sshll.u32 [#allocation10], 4
      %s653 = int_to_ptr.vmem [resolvable:$true] %s652
      %655 = dma.vmem_to_hbm [thread:$0]  %s653, 32, %s4, [#allocation4]
    $region37: #{discriminator_forward.7} parent=1 // pred_fallthru
      _
    // Predicated region
    $region38: #{discriminator_forward.7} parent=1 // pred_check
      _
    $region39: #{discriminator_forward.7} parent=1 // pred_check_branch
      %657 = sbr.rel (0) target = $region41
    $region40: #{discriminator_forward.7} parent=1 // pred_region
      %658 = dma.done [#allocation4], 32
    $region41: #{discriminator_forward.7} parent=1 // pred_fallthru
      _
    %659 = vsyncpa [#allocation3], 1
    %660 = vsyncpa [#allocation6], 1
    %661 = vsyncpa [#allocation9], 1
    %662 = vsyncpa [#allocation4], 1

// kernel: discriminator_forward.6
$region0: #{discriminator_forward.6}
  #allocation0 [shape = 'u32[]', space=smem, size = 0x4, offset = 0x4, fixed_abs, tag = 'smem constant byte address 0x4 - core index']
  #allocation1 [shape = 'u32[144,128]{1,0:T(1,128)}', space=vmem, size = 0x12000, scoped, tag = 'internal scratch']
  #allocation2 [shape = 'f32[1,128]{1,0:T(1,128)}', space=vmem, size = 0x200, scoped, tag = 'scratch operand']
  #allocation3 [shape = 'f32[1,128]{1,0:T(1,128)}', space=vmem, size = 0x200, scoped, tag = 'scratch operand']
  %s0 = inlined_call_operand.hbm [shape: bf16[8,288], index: 0, kind: input, shape index: {}]
  %s1 = inlined_call_operand.hbm [shape: bf16[288,128], index: 1, kind: input, shape index: {}]
  %s2 = inlined_call_operand.hbm [shape: bf16[8,128], index: 2, kind: output, shape index: {}]
  %s3 = sld [smem:[#allocation0]]
  $region61: #{discriminator_forward.6} parent=0
    _
  %s5 = ssub.s32 1, %s3
  %s6 = scalar_select 0, %s5, %s3
  $region1: #{discriminator_forward.6} parent=0
    #allocation4 [shape = 'u8[6144]{0}', space=vmem, size = 0x1800, scoped, tag = 'input window, operand 0, single buffered']
    #allocation5 [shape = 's32[2]{0}', space=sflag, size = 0x8, scoped, tag = 'scoped memory for discriminator_forward.6']
    #allocation6 [shape = 's32[2]{0}', space=sflag, size = 0x8, scoped, tag = 'scoped memory for discriminator_forward.6']
    #allocation7 [shape = 'u8[73728]{0}', space=vmem, size = 0x12000, scoped, tag = 'input window, operand 1, single buffered']
    #allocation8 [shape = 's32[1]{0}', space=sflag, size = 0x4, scoped, tag = 'scoped memory for discriminator_forward.6']
    #allocation9 [shape = 'u8[2048]{0}', space=vmem, size = 0x800, scoped, tag = 'output window, operand 0, single buffered']
    %7 = vsyncpa [#allocation5], 0
    %8 = vsyncpa [#allocation8], 0
    %9 = vsyncpa [#allocation6], 0
    loop: start=0, step=1, limit=4
    $region2: #{discriminator_forward.6} parent=1 // loop_pre_header
      _
    $region3: #{discriminator_forward.6} parent=1 // loop_header
      %s11 = sphi 0, %s15
      %p12 = scmp.ge.s32.totalorder %s11, 4
      %s18 = sphi 0, %s30
      %s19 = sphi 0, %s26
      %s20 = sphi 0, %s18
      %s21 = sphi 0, %s19
      %s22 = sphi 0, %s20
      %s23 = sphi 0, %s21
      %s33 = sphi 0, %s35
      %s36 = sphi 0, %s33
      %s37 = sphi 0, %s36
      %s53 = sphi 0, %s37
      %s57 = sphi 0, %s57
      %s59 = sphi 0, %s57
      %s60 = sphi 0, %s59
      %s74 = sphi 0, %s60
      %s80 = sphi 0, %s82
      %s83 = sphi 0, %s80
      %s84 = sphi 0, %s83
      %s100 = sphi 0, %s84
    $region4: #{discriminator_forward.6} parent=1 // loop_header_branch
      %14 = sbr.rel (%p12) target = $region8
    $region5: #{discriminator_forward.6} parent=1 // loop_body
      %s16 = ssub.s32 %s11, 1
      %s17 = ssub.s32 %s11, 2
      %s24 = sadd.s32 1, %s19
      %p25 = scmp.ge.s32.totalorder %s24, 1
      %s26 = scalar_select %p25, 0, %s24
      %s27 = sadd.s32 1, %s18
      %s28 = scalar_select %p25, %s27, %s18
      %p29 = scmp.ge.s32.totalorder %s28, 2
      %s30 = scalar_select %p29, 0, %s28
      %s31 = ssub.s32 %s19, %s26
      %p32 = scmp.eq.s32.totalorder %s31, 0
      %s34 = sadd.s32 %s33, 1
      %s35 = scalar_select %p32, %s33, %s34
      %p38 = pneg %p32
      %p39 = scmp.eq.s32.totalorder %s11, 1
      %p40 = por %p38, %p39
      %p41 = scmp.ne.s32.totalorder %s33, %s36
      %p42 = scmp.eq.s32.totalorder %s11, 0
      %p43 = por %p41, %p42
      %p44 = scmp.ne.s32.totalorder %s33, %s36
      %p45 = scmp.eq.s32.totalorder %s16, 1
      %p46 = por %p44, %p45
      %p47 = scmp.ne.s32.totalorder %s36, %s37
      %p48 = scmp.eq.s32.totalorder %s16, 0
      %p49 = por %p47, %p48
      %p50 = scmp.ne.s32.totalorder %s36, %s37
      %p51 = scmp.eq.s32.totalorder %s17, 1
      %p52 = por %p50, %p51
      %p54 = scmp.ne.s32.totalorder %s37, %s53
      %p55 = scmp.eq.s32.totalorder %s17, 0
      %p56 = por %p54, %p55
      %s58 = sadd.s32 %s57, 1
      %p61 = scmp.eq.s32.totalorder %s11, 1
      %p62 = scmp.ne.s32.totalorder %s57, %s59
      %p63 = scmp.eq.s32.totalorder %s11, 0
      %p64 = por %p62, %p63
      %p65 = scmp.ne.s32.totalorder %s57, %s59
      %p66 = scmp.eq.s32.totalorder %s16, 1
      %p67 = por %p65, %p66
      %p68 = scmp.ne.s32.totalorder %s59, %s60
      %p69 = scmp.eq.s32.totalorder %s16, 0
      %p70 = por %p68, %p69
      %p71 = scmp.ne.s32.totalorder %s59, %s60
      %p72 = scmp.eq.s32.totalorder %s17, 1
      %p73 = por %p71, %p72
      %p75 = scmp.ne.s32.totalorder %s60, %s74
      %p76 = scmp.eq.s32.totalorder %s17, 0
      %p77 = por %p75, %p76
      %s78 = ssub.s32 %s19, %s26
      %p79 = scmp.eq.s32.totalorder %s78, 0
      %s81 = sadd.s32 %s80, 1
      %s82 = scalar_select %p79, %s80, %s81
      %p85 = pneg %p79
      %p86 = scmp.eq.s32.totalorder %s11, 1
      %p87 = por %p85, %p86
      %p88 = scmp.ne.s32.totalorder %s80, %s83
      %p89 = scmp.eq.s32.totalorder %s11, 0
      %p90 = por %p88, %p89
      %p91 = scmp.ne.s32.totalorder %s80, %s83
      %p92 = scmp.eq.s32.totalorder %s16, 1
      %p93 = por %p91, %p92
      %p94 = scmp.ne.s32.totalorder %s83, %s84
      %p95 = scmp.eq.s32.totalorder %s16, 0
      %p96 = por %p94, %p95
      %p97 = scmp.ne.s32.totalorder %s83, %s84
      %p98 = scmp.eq.s32.totalorder %s17, 1
      %p99 = por %p97, %p98
      %p101 = scmp.ne.s32.totalorder %s84, %s100
      %p102 = scmp.eq.s32.totalorder %s17, 0
      %p103 = por %p101, %p102
      %p104 = scmp.le.s32.totalorder 1, %s11
      %p105 = scmp.lt.s32.totalorder %s11, 3
      %p106 = pnand %p104, %p105
      %p107 = pneg %p106
      // Predicated region
      $region9: #{discriminator_forward.6} parent=5 // pred_check
        _
      $region10: #{discriminator_forward.6} parent=5 // pred_check_branch
        %109 = sbr.rel (%p106) target = $region12
      $region11: #{discriminator_forward.6} parent=5 // pred_region
        %s110 = ssub.s32 %s11, 1
        // Predicated region
        $region13: #{discriminator_forward.6} parent=11 // pred_check
          %p111 = pneg %p49
        $region14: #{discriminator_forward.6} parent=11 // pred_check_branch
          %113 = sbr.rel (%p111) target = $region16
        $region15: #{discriminator_forward.6} parent=11 // pred_region
          %s115 = ssub.s32 192, 192
          %116 = vsyncadd [#allocation5], %s115
          %s117 = smul.addr %s21, 3
          %s118 = smul.addr %s117, 64
          %s119 = scalar_lea.hbm %s0, %s118
          %s121 = sshll.u32 [#allocation4], 4
          %s122 = int_to_ptr.vmem [resolvable:$true] %s121
          %124 = dma.hbm_to_vmem [thread:$0]  %s119, 192, %s122, [#allocation5]
        $region16: #{discriminator_forward.6} parent=11 // pred_fallthru
          _
        // Predicated region
        $region17: #{discriminator_forward.6} parent=11 // pred_check
          %p125 = pneg %p70
        $region18: #{discriminator_forward.6} parent=11 // pred_check_branch
          %127 = sbr.rel (%p125) target = $region20
        $region19: #{discriminator_forward.6} parent=11 // pred_region
          %s129 = ssub.s32 2304, 2304
          %130 = vsyncadd [#allocation8], %s129
          %s131 = sshll.u32 [#allocation7], 4
          %s132 = int_to_ptr.vmem [resolvable:$true] %s131
          %137 = dma.hbm_to_vmem [thread:$0]  %s1, 2304, %s132, [#allocation8], 64, 64, 4
        $region20: #{discriminator_forward.6} parent=11 // pred_fallthru
          _
      $region12: #{discriminator_forward.6} parent=5 // pred_fallthru
        _
      %p138 = scmp.lt.s32.totalorder %s11, 2
      // Predicated region
      $region21: #{discriminator_forward.6} parent=5 // pred_check
        %p139 = pneg %p138
      $region22: #{discriminator_forward.6} parent=5 // pred_check_branch
        %141 = sbr.rel (%p139) target = $region24
      $region23: #{discriminator_forward.6} parent=5 // pred_region
        _
      $region24: #{discriminator_forward.6} parent=5 // pred_fallthru
        _
      %p142 = scmp.le.s32.totalorder 1, %s11
      %p143 = scmp.lt.s32.totalorder %s11, 3
      %p144 = pnand %p142, %p143
      %p145 = pneg %p144
      // Predicated region
      $region25: #{discriminator_forward.6} parent=5 // pred_check
        _
      $region26: #{discriminator_forward.6} parent=5 // pred_check_branch
        %147 = sbr.rel (%p144) target = $region28
      $region27: #{discriminator_forward.6} parent=5 // pred_region
        %s148 = ssub.s32 %s11, 1
        // Predicated region
        $region29: #{discriminator_forward.6} parent=27 // pred_check
          %p149 = pneg %p49
        $region30: #{discriminator_forward.6} parent=27 // pred_check_branch
          %151 = sbr.rel (%p149) target = $region32
        $region31: #{discriminator_forward.6} parent=27 // pred_region
          %152 = dma.done [#allocation5], 192
        $region32: #{discriminator_forward.6} parent=27 // pred_fallthru
          _
        // Predicated region
        $region33: #{discriminator_forward.6} parent=27 // pred_check
          %p153 = pneg %p70
        $region34: #{discriminator_forward.6} parent=27 // pred_check_branch
          %155 = sbr.rel (%p153) target = $region36
        $region35: #{discriminator_forward.6} parent=27 // pred_region
          %156 = dma.done [#allocation8], 2304
        $region36: #{discriminator_forward.6} parent=27 // pred_fallthru
          _
        %p157 = pneg %p49
        %p158 = pneg %p46
        %p159 = pneg %p70
        %p160 = pneg %p67
        %p161 = pneg %p96
        %p162 = pneg %p93
        %p164 = scmp.eq.s32.totalorder %s20, 0
        %p165 = scmp.eq.s32.totalorder %s21, 0
        %p166 = pnand %p164, %p165
        %p167 = pneg %p166
        // Predicated region
        $region37: #{discriminator_forward.6} parent=27 // pred_check
          _
        $region38: #{discriminator_forward.6} parent=27 // pred_check_branch
          %169 = sbr.rel (%p166) target = $region40
        $region39: #{discriminator_forward.6} parent=27 // pred_region
          %170 = vst [vmem:[#allocation2] sm:$0x1] 0.0
          %171 = vst [vmem:[#allocation3] sm:$0x1] 0.0
        $region40: #{discriminator_forward.6} parent=27 // pred_fallthru
          _
        %v172 = vld [vmem:[#allocation4] sm:$0xff]
        %v173 = vld [vmem:[#allocation4 + $0x8] sm:$0xf]
        %v174 = vld [vmem:[#allocation7] sm:$0xf]
        %v175 = vld [vmem:[#allocation7 + $0x4] sm:$0xf]
        %v176 = vld [vmem:[#allocation7 + $0x8] sm:$0xf]
        %v177 = vld [vmem:[#allocation7 + $0xc] sm:$0xf]
        %v178 = vld [vmem:[#allocation7 + $0x10] sm:$0xf]
        %v179 = vld [vmem:[#allocation7 + $0x14] sm:$0xf]
        %v180 = vld [vmem:[#allocation7 + $0x18] sm:$0xf]
        %v181 = vld [vmem:[#allocation7 + $0x1c] sm:$0xf]
        %v182 = vld [vmem:[#allocation7 + $0x20] sm:$0xf]
        %v183 = vld [vmem:[#allocation7 + $0x24] sm:$0xf]
        %v184 = vld [vmem:[#allocation7 + $0x28] sm:$0xf]
        %v185 = vld [vmem:[#allocation7 + $0x2c] sm:$0xf]
        %v186 = vld [vmem:[#allocation7 + $0x30] sm:$0xf]
        %v187 = vld [vmem:[#allocation7 + $0x34] sm:$0xf]
        %v188 = vld [vmem:[#allocation7 + $0x38] sm:$0xf]
        %v189 = vld [vmem:[#allocation7 + $0x3c] sm:$0xf]
        %v190 = vld [vmem:[#allocation7 + $0x40] sm:$0xf]
        %v191 = vld [vmem:[#allocation7 + $0x44] sm:$0xf]
        %v192 = vld [vmem:[#allocation7 + $0x48] sm:$0xf]
        %v193 = vld [vmem:[#allocation7 + $0x4c] sm:$0xf]
        %v194 = vld [vmem:[#allocation7 + $0x50] sm:$0xf]
        %v195 = vld [vmem:[#allocation7 + $0x54] sm:$0xf]
        %v196 = vld [vmem:[#allocation7 + $0x58] sm:$0xf]
        %v197 = vld [vmem:[#allocation7 + $0x5c] sm:$0xf]
        %v198 = vld [vmem:[#allocation7 + $0x60] sm:$0xf]
        %v199 = vld [vmem:[#allocation7 + $0x64] sm:$0xf]
        %v200 = vld [vmem:[#allocation7 + $0x68] sm:$0xf]
        %v201 = vld [vmem:[#allocation7 + $0x6c] sm:$0xf]
        %v202 = vld [vmem:[#allocation7 + $0x70] sm:$0xf]
        %v203 = vld [vmem:[#allocation7 + $0x74] sm:$0xf]
        %v204 = vld [vmem:[#allocation7 + $0x78] sm:$0xf]
        %v205 = vld [vmem:[#allocation7 + $0x7c] sm:$0xf]
        %v206 = vld [vmem:[#allocation7 + $0x80] sm:$0xf]
        %v207 = vld [vmem:[#allocation7 + $0x84] sm:$0xf]
        %v208 = vld [vmem:[#allocation7 + $0x88] sm:$0xf]
        %v209 = vld [vmem:[#allocation7 + $0x8c] sm:$0xf]
        %v212 = vunpack.c.l.b16 %v172
        %v213 = vunpack.c.h.b16 %v172
        %v214 = vunpack.c.l.b16 %v173
        %v215 = vpack.c.b16 %v212, %v212
        %v216 = vpack.c.b16 %v213, %v213
        %v217 = vpack.c.b16 %v214, %v214
        %v256 = vunpack.c.l.b16 %v174
        %v257 = vunpack.c.l.b16 %v175
        %v258 = vunpack.c.l.b16 %v176
        %v259 = vunpack.c.l.b16 %v177
        %v260 = vunpack.c.l.b16 %v178
        %v261 = vunpack.c.l.b16 %v179
        %v262 = vunpack.c.l.b16 %v180
        %v263 = vunpack.c.l.b16 %v181
        %v264 = vunpack.c.l.b16 %v182
        %v265 = vunpack.c.l.b16 %v183
        %v266 = vunpack.c.l.b16 %v184
        %v267 = vunpack.c.l.b16 %v185
        %v268 = vunpack.c.l.b16 %v186
        %v269 = vunpack.c.l.b16 %v187
        %v270 = vunpack.c.l.b16 %v188
        %v271 = vunpack.c.l.b16 %v189
        %v272 = vunpack.c.l.b16 %v190
        %v273 = vunpack.c.l.b16 %v191
        %v274 = vunpack.c.l.b16 %v192
        %v275 = vunpack.c.l.b16 %v193
        %v276 = vunpack.c.l.b16 %v194
        %v277 = vunpack.c.l.b16 %v195
        %v278 = vunpack.c.l.b16 %v196
        %v279 = vunpack.c.l.b16 %v197
        %v280 = vunpack.c.l.b16 %v198
        %v281 = vunpack.c.l.b16 %v199
        %v282 = vunpack.c.l.b16 %v200
        %v283 = vunpack.c.l.b16 %v201
        %v284 = vunpack.c.l.b16 %v202
        %v285 = vunpack.c.l.b16 %v203
        %v286 = vunpack.c.l.b16 %v204
        %v287 = vunpack.c.l.b16 %v205
        %v288 = vunpack.c.l.b16 %v206
        %v289 = vunpack.c.l.b16 %v207
        %v290 = vunpack.c.l.b16 %v208
        %v291 = vunpack.c.l.b16 %v209
        %v292 = vpack.c.b16 %v257, %v256
        %v293 = vpack.c.b16 %v259, %v258
        %v294 = vpack.c.b16 %v261, %v260
        %v295 = vpack.c.b16 %v263, %v262
        %v296 = vpack.c.b16 %v265, %v264
        %v297 = vpack.c.b16 %v267, %v266
        %v298 = vpack.c.b16 %v269, %v268
        %v299 = vpack.c.b16 %v271, %v270
        %v300 = vpack.c.b16 %v273, %v272
        %v301 = vpack.c.b16 %v275, %v274
        %v302 = vpack.c.b16 %v277, %v276
        %v303 = vpack.c.b16 %v279, %v278
        %v304 = vpack.c.b16 %v281, %v280
        %v305 = vpack.c.b16 %v283, %v282
        %v306 = vpack.c.b16 %v285, %v284
        %v307 = vpack.c.b16 %v287, %v286
        %v308 = vpack.c.b16 %v289, %v288
        %v309 = vpack.c.b16 %v291, %v290
        %vm328 = vcmask 261120
        %v330 = vsel %vm328, %v217, 0
        %332 = vmatprep.subr.bf16.mxu0 0
        %333 = vmatpush1.bf16.msra.mxu0 %v292
        %334 = vmatprep.subr.bf16.mxu0 0
        %335 = vmatpush1.bf16.msra.mxu0 %v293
        %336 = vmatprep.subr.bf16.mxu0 0
        %337 = vmatpush1.bf16.msra.mxu0 %v294
        %338 = vmatprep.subr.bf16.mxu0 0
        %339 = vmatpush1.bf16.msra.mxu0 %v295
        %340 = vmatprep.subr.bf16.mxu0 0
        %341 = vmatpush1.bf16.msra.mxu0 %v296
        %342 = vmatprep.subr.bf16.mxu0 0
        %343 = vmatpush1.bf16.msra.mxu0 %v297
        %344 = vmatprep.subr.bf16.mxu0 0
        %345 = vmatpush1.bf16.msra.mxu0 %v298
        %346 = vmatprep.subr.bf16.mxu0 0
        %347 = vmatpush1.bf16.msra.mxu0 %v299
        %348 = vmatprep.subr.bf16.mxu0 0
        %349 = vmatpush1.bf16.msra.mxu0 %v300
        %350 = vmatprep.subr.bf16.mxu0 0
        %351 = vmatpush1.bf16.msra.mxu0 %v301
        %352 = vmatprep.subr.bf16.mxu0 0
        %353 = vmatpush1.bf16.msra.mxu0 %v302
        %354 = vmatprep.subr.bf16.mxu0 0
        %355 = vmatpush1.bf16.msra.mxu0 %v303
        %356 = vmatprep.subr.bf16.mxu0 0
        %357 = vmatpush1.bf16.msra.mxu0 %v304
        %358 = vmatprep.subr.bf16.mxu0 0
        %359 = vmatpush1.bf16.msra.mxu0 %v305
        %360 = vmatprep.subr.bf16.mxu0 0
        %361 = vmatpush1.bf16.msra.mxu0 %v306
        %362 = vmatprep.subr.bf16.mxu0 0
        %363 = vmatpush1.bf16.msra.mxu0 %v307
        %364 = vmatprep.mubr.bf16.mxu0 %v216
        %365 = vmatmul.mubr.bf16.gmra.mrb[0].mxu0 %v215
        %v366 = vpop.f32.mrb[0].mxu0
        %v367 = vadd.f32 0.0, %v366
        %v368 = vpop.f32.mrb[0].mxu0
        %v369 = vpop.f32.mrb[0].mxu0
        %v370 = vpop.f32.mrb[0].mxu0
        %371 = vdwg.mxu0
        %372 = vmatprep.subr.bf16.mxu0 0
        %373 = vmatpush1.bf16.msra.mxu0 %v308
        %374 = vmatprep.subr.bf16.mxu0 0
        %375 = vmatpush1.bf16.msra.mxu0 %v309
        %376 = vmatprep.subr.bf16.mxu0 0
        %377 = vmatpush1.bf16.msra.mxu0 0
        %378 = vmatprep.subr.bf16.mxu0 0
        %379 = vmatpush1.bf16.msra.mxu0 0
        %380 = vmatprep.subr.bf16.mxu0 0
        %381 = vmatpush1.bf16.msra.mxu0 0
        %382 = vmatprep.subr.bf16.mxu0 0
        %383 = vmatpush1.bf16.msra.mxu0 0
        %384 = vmatprep.subr.bf16.mxu0 0
        %385 = vmatpush1.bf16.msra.mxu0 0
        %386 = vmatprep.subr.bf16.mxu0 0
        %387 = vmatpush1.bf16.msra.mxu0 0
        %388 = vmatprep.subr.bf16.mxu0 0
        %389 = vmatpush1.bf16.msra.mxu0 0
        %390 = vmatprep.subr.bf16.mxu0 0
        %391 = vmatpush1.bf16.msra.mxu0 0
        %392 = vmatprep.subr.bf16.mxu0 0
        %393 = vmatpush1.bf16.msra.mxu0 0
        %394 = vmatprep.subr.bf16.mxu0 0
        %395 = vmatpush1.bf16.msra.mxu0 0
        %396 = vmatprep.subr.bf16.mxu0 0
        %397 = vmatpush1.bf16.msra.mxu0 0
        %398 = vmatprep.subr.bf16.mxu0 0
        %399 = vmatpush1.bf16.msra.mxu0 0
        %400 = vmatprep.subr.bf16.mxu0 0
        %401 = vmatpush1.bf16.msra.mxu0 0
        %402 = vmatprep.subr.bf16.mxu0 0
        %403 = vmatpush1.bf16.msra.mxu0 0
        %404 = vmatprep.mubr.bf16.mxu0 0
        %405 = vmatmul.mubr.bf16.gmra.mrb[0].mxu0 %v330
        %v406 = vpop.f32.mrb[0].mxu0
        %v407 = vadd.f32 %v367, %v406
        %v408 = vpop.f32.mrb[0].mxu0
        %v409 = vpop.f32.mrb[0].mxu0
        %v410 = vpop.f32.mrb[0].mxu0
        %411 = vdwg.mxu0
        %s412 = smul.u32 %s21, 8
        %v413 = vlaneseq
        %v414 = vshrl.u32 %v413, 7
        %v415 = vstv %s412
        %v416 = vadd.s32 %v415, %v414
        %vm417 = vcmp.lt.s32.totalorder %v416, 8
        // Predicated region
        $region41: #{discriminator_forward.6} parent=27 // pred_check
          %p418 = pneg %p164
        $region42: #{discriminator_forward.6} parent=27 // pred_check_branch
          %420 = sbr.rel (%p418) target = $region44
        $region43: #{discriminator_forward.6} parent=27 // pred_region
          %v421 = vsel %vm417, %v407, 0.0
          %v422 = vld [vmem:[#allocation2] sm:$0x1]
          %v423 = vrot.slane %v421, 4
          %v424 = vadd.f32 %v421, %v423
          %v425 = vrot.slane %v424, 2
          %v426 = vadd.f32 %v424, %v425
          %v427 = vrot.slane %v426, 1
          %v428 = vadd.f32 %v426, %v427
          %v429 = vadd.f32 %v422, %v428
          %430 = vst [vmem:[#allocation2] sm:$0x1] %v429
          %v431 = vld [vmem:[#allocation3] sm:$0x1]
          %v432 = vmul.f32 %v421, %v421
          %v433 = vrot.slane %v432, 4
          %v434 = vadd.f32 %v432, %v433
          %v435 = vrot.slane %v434, 2
          %v436 = vadd.f32 %v434, %v435
          %v437 = vrot.slane %v436, 1
          %v438 = vadd.f32 %v436, %v437
          %v439 = vadd.f32 %v431, %v438
          %440 = vst [vmem:[#allocation3] sm:$0x1] %v439
        $region44: #{discriminator_forward.6} parent=27 // pred_fallthru
          _
        %p441 = scmp.eq.s32.totalorder %s20, 1
        // Predicated region
        $region45: #{discriminator_forward.6} parent=27 // pred_check
          %p442 = pneg %p441
        $region46: #{discriminator_forward.6} parent=27 // pred_check_branch
          %444 = sbr.rel (%p442) target = $region48
        $region47: #{discriminator_forward.6} parent=27 // pred_region
          %v445 = vld [vmem:[#allocation2] sm:$0x1]
          %v446 = vmul.f32 %v445, 0.125
          %v447 = vld [vmem:[#allocation3] sm:$0x1]
          %v448 = vmul.f32 %v447, 0.125
          %v449 = vmul.f32 %v446, %v446
          %v450 = vsub.f32 %v448, %v449
          %v451 = vmax.f32 %v450, 0.0
          %v453 = vlaneseq
          %v454 = vshrl.u32 %v453, 7
          %v455 = vsub.s32 0, %v454
          %v456 = vrot.slane %v446, %v455
          %v458 = vsub.f32 %v407, %v456
          %v459 = vadd.f32 %v451, 1e-05
          %v460 = vrsqrt.pop %v459
          %v462 = vlaneseq
          %v463 = vshrl.u32 %v462, 7
          %v464 = vsub.s32 0, %v463
          %v465 = vrot.slane %v460, %v464
          %v467 = vmul.f32 %v458, %v465
          %v468 = vmul.f32 %v467, 0.2
          %v469 = vmax.f32 %v467, %v468
          %v470 = vpack.c.bf16 %v469, %v469
          %471 = vst [vmem:[#allocation9] sm:$0xf] %v470
        $region48: #{discriminator_forward.6} parent=27 // pred_fallthru
          _
        // Predicated region
        $region49: #{discriminator_forward.6} parent=27 // pred_check
          %p472 = pneg %p93
        $region50: #{discriminator_forward.6} parent=27 // pred_check_branch
          %474 = sbr.rel (%p472) target = $region52
        $region51: #{discriminator_forward.6} parent=27 // pred_region
          %s476 = ssub.s32 64, 64
          %477 = vsyncadd [#allocation6], %s476
          %s478 = smul.addr %s21, 64
          %s479 = scalar_lea.hbm %s2, %s478
          %s481 = sshll.u32 [#allocation9], 4
          %s482 = int_to_ptr.vmem [resolvable:$true] %s481
          %484 = dma.vmem_to_hbm [thread:$0]  %s482, 64, %s479, [#allocation6]
        $region52: #{discriminator_forward.6} parent=27 // pred_fallthru
          _
        // Predicated region
        $region53: #{discriminator_forward.6} parent=27 // pred_check
          %p485 = pneg %p93
        $region54: #{discriminator_forward.6} parent=27 // pred_check_branch
          %487 = sbr.rel (%p485) target = $region56
        $region55: #{discriminator_forward.6} parent=27 // pred_region
          %488 = dma.done [#allocation6], 64
        $region56: #{discriminator_forward.6} parent=27 // pred_fallthru
          _
      $region28: #{discriminator_forward.6} parent=5 // pred_fallthru
        _
      %p489 = scmp.le.s32.totalorder 2, %s11
      // Predicated region
      $region57: #{discriminator_forward.6} parent=5 // pred_check
        %p490 = pneg %p489
      $region58: #{discriminator_forward.6} parent=5 // pred_check_branch
        %492 = sbr.rel (%p490) target = $region60
      $region59: #{discriminator_forward.6} parent=5 // pred_region
        %s493 = ssub.s32 %s11, 2
      $region60: #{discriminator_forward.6} parent=5 // pred_fallthru
        _
    $region6: #{discriminator_forward.6} parent=1 // loop_footer
      %s15 = sadd.s32 1, %s11
    $region7: #{discriminator_forward.6} parent=1 // loop_footer_branch
      %10 = sbr.rel target = $region3
    $region8: #{discriminator_forward.6} parent=1 // loop_exit
      _
    %494 = vsyncpa [#allocation5], 1
    %s495 = scalar_lea.sflag [#allocation5], 1
    %496 = vsyncpa %s495, 1
    %497 = vsyncpa [#allocation8], 1
    %498 = vsyncpa [#allocation6], 1
    %s499 = scalar_lea.sflag [#allocation6], 1
    %500 = vsyncpa %s499, 1

</llo_original>
